<compile_context>
chip_gen: v5e
topology: v5e:2x2
jax: 0.10.0
libtpu: 0.0.40
codegen_flags: <defaults>
</compile_context>

<pallas_src>
import jax
import jax.numpy as jnp
from jax import lax
from jax.experimental import pallas as pl
from jax.experimental.pallas import tpu as pltpu


def pam_kernel(xq_ref, xk_ref, wq_ref, bq_ref, wkv_ref, bkv_ref, gamma_ref,
               out_ref, q_sc, acc_sc, m_sc, l_sc):
    """One (batch, q-tile, k-tile) step of flash-style position attention."""
    C = out_ref.shape[-1]          # value / output channel count (static)
    ki = pl.program_id(2)
    nk = pl.num_programs(2)

    # ---- per-(b, q-tile) init: project the query tile once, reset softmax state
    @pl.when(ki == 0)
    def _():
        xq = xq_ref[0]                                                 # (TQ, C)
        q = jnp.dot(xq, wq_ref[...],
                    preferred_element_type=jnp.float32) + bq_ref[...]  # (TQ, C8)
        q_sc[...] = q.astype(jnp.bfloat16)
        m_sc[...] = jnp.full_like(m_sc, -jnp.inf)
        l_sc[...] = jnp.zeros_like(l_sc)
        acc_sc[...] = jnp.zeros_like(acc_sc)

    # ---- fused key/value projection of this key tile (one wide MXU matmul)
    xk = xk_ref[0]                                                     # (TK, C)
    kv = jnp.dot(xk, wkv_ref[...],
                 preferred_element_type=jnp.float32) + bkv_ref[...]    # (TK, C+C8)
    v = kv[:, :C].astype(jnp.bfloat16)                                 # (TK, C)
    k = kv[:, C:].astype(jnp.bfloat16)                                 # (TK, C8)

    # ---- scores: q @ k^T via dot_general (contract last dims, no explicit .T)
    s = lax.dot_general(q_sc[...], k,
                        dimension_numbers=(((1,), (1,)), ((), ())),
                        preferred_element_type=jnp.float32)            # (TQ, TK)

    # ---- online (flash) softmax update
    m_prev = m_sc[...]
    m_new = jnp.maximum(m_prev, jnp.max(s, axis=-1, keepdims=True))
    alpha = jnp.exp(m_prev - m_new)
    p = jnp.exp(s - m_new)                                             # (TQ, TK)
    l_sc[...] = alpha * l_sc[...] + jnp.sum(p, axis=-1, keepdims=True)
    acc_sc[...] = alpha * acc_sc[...] + jnp.dot(
        p.astype(jnp.bfloat16), v, preferred_element_type=jnp.float32)
    m_sc[...] = m_new

    # ---- finalize: normalize, scale by gamma, add residual
    @pl.when(ki == nk - 1)
    def _():
        gamma = gamma_ref[0]                                    # SMEM scalar
        inv_l = pl.reciprocal(l_sc[...], approx=True)           # EUP, not VALU
        out = gamma * (acc_sc[...] * inv_l) + xq_ref[0]
        out_ref[0] = out.astype(out_ref.dtype)


def _pick_tile(n):
    """Largest convenient tile dividing n (falls back to n for odd sizes)."""
    for t in (512, 256, 128):
        if n >= t and n % t == 0:
            return t
    return n


def pam_forward(x, wq, bq, wk, bk, wv, bv, gamma, *, tq=None, tk=None):
    """x: (B, C, H, W) float32 NCHW.  Conv weights in PyTorch layout
    (C_out, C_in, 1, 1); biases (C_out,); gamma shaped (1,)."""
    B, C, H, W = x.shape
    N = H * W
    C8 = C // 8
    assert C8 >= 1, "in_dim must be >= 8 (query/key width is in_dim // 8)"

    tq = _pick_tile(N) if tq is None else tq
    tk = _pick_tile(N) if tk is None else tk
    assert N % tq == 0 and N % tk == 0

    # NCHW -> (B, N, C): channels on lanes.
    # NOTE: for real DANet C >= 64 so the output tile is lane-dense; with very
    # small C the final stores are masked (acceptable for toy shapes).
    x_nc = jnp.transpose(x.reshape(B, C, N), (0, 2, 1)).astype(jnp.float32)

    # (C_out, C_in, 1, 1) -> (C_in, C_out) so the kernel does x @ W.
    wq_t = wq.reshape(C8, C).T.astype(jnp.float32)            # (C, C8)
    wk_t = wk.reshape(C8, C).T.astype(jnp.float32)            # (C, C8)
    wv_t = wv.reshape(C, C).T.astype(jnp.float32)             # (C, C)
    # Fuse key/value projections (value first so v = kv[:, :C] stays aligned).
    wkv_t = jnp.concatenate([wv_t, wk_t], axis=1)             # (C, C + C8)
    bkv = jnp.concatenate([bv, bk]).reshape(1, C + C8).astype(jnp.float32)
    bq2 = bq.reshape(1, C8).astype(jnp.float32)
    g = gamma.reshape(1).astype(jnp.float32)

    grid = (B, N // tq, N // tk)

    out_nc = pl.pallas_call(
        pam_kernel,
        out_shape=jax.ShapeDtypeStruct((B, N, C), jnp.float32),
        grid=grid,
        in_specs=[
            pl.BlockSpec((1, tq, C), lambda b, qi, ki: (b, qi, 0)),   # x (q tile)
            pl.BlockSpec((1, tk, C), lambda b, qi, ki: (b, ki, 0)),   # x (k tile)
            pl.BlockSpec((C, C8), lambda b, qi, ki: (0, 0)),          # Wq^T
            pl.BlockSpec((1, C8), lambda b, qi, ki: (0, 0)),          # bq
            pl.BlockSpec((C, C + C8), lambda b, qi, ki: (0, 0)),      # [Wv^T|Wk^T]
            pl.BlockSpec((1, C + C8), lambda b, qi, ki: (0, 0)),      # [bv|bk]
            pl.BlockSpec(memory_space=pltpu.MemorySpace.SMEM),        # gamma
        ],
        out_specs=pl.BlockSpec((1, tq, C), lambda b, qi, ki: (b, qi, 0)),
        scratch_shapes=[
            pltpu.VMEM((tq, C8), jnp.bfloat16),   # q tile (persists over ki)
            pltpu.VMEM((tq, C), jnp.float32),     # output accumulator
            pltpu.VMEM((tq, 1), jnp.float32),     # running max
            pltpu.VMEM((tq, 1), jnp.float32),     # running denominator
        ],
        compiler_params=pltpu.CompilerParams(
            dimension_semantics=("parallel", "parallel", "arbitrary"),
            vmem_limit_bytes=48 * 1024 * 1024),
    )(x_nc, x_nc, wq_t, bq2, wkv_t, bkv, g)

    # (B, N, C) -> NCHW
    return jnp.transpose(out_nc, (0, 2, 1)).reshape(B, C, H, W)


def pam_reference(x, wq, bq, wk, bk, wv, bv, gamma):
    """Pure-JAX f32 reference mirroring the PyTorch forward exactly (NCHW)."""
    B, C, H, W = x.shape
    N = H * W
    C8 = C // 8

    def conv1x1(x, w, b):  # w: (Cout, Cin, 1, 1)
        return jnp.einsum('bchw,oc->bohw', x, w.reshape(w.shape[0], C)) + \
            b.reshape(1, -1, 1, 1)

    q = conv1x1(x, wq, bq).reshape(B, C8, N).transpose(0, 2, 1)   # (B, N, C8)
    k = conv1x1(x, wk, bk).reshape(B, C8, N)                      # (B, C8, N)
    energy = jnp.einsum('bnc,bcm->bnm', q, k)                     # (B, N, N)
    attn = jax.nn.softmax(energy, axis=-1)
    v = conv1x1(x, wv, bv).reshape(B, C, N)                       # (B, C, N)
    out = jnp.einsum('bcn,bmn->bcm', v, attn).reshape(B, C, H, W)
    return gamma[0] * out + x


if __name__ == "__main__":
    B, C, H, W = 2, 16, 16, 16   # C must be >= 8 (query/key width is C // 8)
    key = jax.random.PRNGKey(0)
    kx, kq, kbq, kk, kbk, kv, kbv = jax.random.split(key, 7)

    x = jax.random.normal(kx, (B, C, H, W), dtype=jnp.float32)

    C8 = C // 8
    wq = 0.1 * jax.random.normal(kq, (C8, C, 1, 1), dtype=jnp.float32)
    bq = 0.05 * jax.random.normal(kbq, (C8,), dtype=jnp.float32)
    wk = 0.1 * jax.random.normal(kk, (C8, C, 1, 1), dtype=jnp.float32)
    bk = 0.05 * jax.random.normal(kbk, (C8,), dtype=jnp.float32)
    wv = 0.1 * jax.random.normal(kv, (C, C, 1, 1), dtype=jnp.float32)
    bv = 0.05 * jax.random.normal(kbv, (C,), dtype=jnp.float32)
    # PyTorch initializes gamma to 0 (output == input); use a nonzero value
    # so the attention path actually contributes and can be verified.
    gamma = jnp.array([0.5], dtype=jnp.float32)

    # N = 256 with tq = tk = 128 exercises the online-softmax tiling (2 k-tiles).
    out = jax.block_until_ready(
        pam_forward(x, wq, bq, wk, bk, wv, bv, gamma, tq=128, tk=128))
    ref = pam_reference(x, wq, bq, wk, bk, wv, bv, gamma)

    assert out.shape == (B, C, H, W)
    err = float(jnp.max(jnp.abs(out - ref)))
    # bf16 MXU operands + approx reciprocal => tolerance looser than pure f32.
    assert err < 2e-2, f"max abs err = {err}"
    print("KERNEL_OK")
</pallas_src>

<mosaic_0001>
module attributes {stable_mosaic.version = 11 : i64} {
  func.func @pam_kernel(%arg0: i32, %arg1: i32, %arg2: i32, %arg3: memref<1x128x16xf32, #tpu.memory_space<vmem>>, %arg4: memref<1x128x16xf32, #tpu.memory_space<vmem>>, %arg5: memref<16x2xf32, #tpu.memory_space<vmem>>, %arg6: memref<1x2xf32, #tpu.memory_space<vmem>>, %arg7: memref<16x18xf32, #tpu.memory_space<vmem>>, %arg8: memref<1x18xf32, #tpu.memory_space<vmem>>, %arg9: memref<1xf32, #tpu.memory_space<smem>>, %arg10: memref<1x128x16xf32, #tpu.memory_space<vmem>>, %arg11: memref<128x2xbf16, #tpu.memory_space<vmem>>, %arg12: memref<128x16xf32, #tpu.memory_space<vmem>>, %arg13: memref<128x1xf32, #tpu.memory_space<vmem>>, %arg14: memref<128x1xf32, #tpu.memory_space<vmem>>) attributes {dimension_semantics = [#tpu.dimension_semantics<parallel>, #tpu.dimension_semantics<parallel>, #tpu.dimension_semantics<arbitrary>], iteration_bounds = array<i64: 2, 2, 2>, scalar_prefetch = 0 : i64, scratch_operands = 4 : i64, tpu.core_type = #tpu.core_type<tc>, window_params = [{transform_indices = @transform_0, window_bounds = array<i64: 1, 128, 16>}, {transform_indices = @transform_1, window_bounds = array<i64: 1, 128, 16>}, {pipeline_mode = #tpu.pipeline_mode<synchronous>, transform_indices = @transform_2, window_bounds = array<i64: 16, 2>}, {pipeline_mode = #tpu.pipeline_mode<synchronous>, transform_indices = @transform_3, window_bounds = array<i64: 1, 2>}, {pipeline_mode = #tpu.pipeline_mode<synchronous>, transform_indices = @transform_4, window_bounds = array<i64: 16, 18>}, {pipeline_mode = #tpu.pipeline_mode<synchronous>, transform_indices = @transform_5, window_bounds = array<i64: 1, 18>}, {transform_indices = @transform_6, window_bounds = array<i64: 1>}, {transform_indices = @transform_7, window_bounds = array<i64: 1, 128, 16>}]} {
    %c0_i32 = arith.constant 0 : i32
    %0 = arith.cmpi eq, %arg2, %c0_i32 : i32
    %1 = arith.extui %0 : i1 to i32
    %c0_i32_0 = arith.constant 0 : i32
    %2 = arith.cmpi ne, %1, %c0_i32_0 : i32
    scf.if %2 {
      %c0_26 = arith.constant 0 : index
      %c0_27 = arith.constant 0 : index
      %c0_28 = arith.constant 0 : index
      %42 = vector.load %arg3[%c0_26, %c0_27, %c0_28] : memref<1x128x16xf32, #tpu.memory_space<vmem>>, vector<1x128x16xf32>
      %43 = vector.shape_cast %42 : vector<1x128x16xf32> to vector<128x16xf32>
      %c0_29 = arith.constant 0 : index
      %c0_30 = arith.constant 0 : index
      %44 = vector.load %arg5[%c0_29, %c0_30] : memref<16x2xf32, #tpu.memory_space<vmem>>, vector<16x2xf32>
      %cst_31 = arith.constant dense<0.000000e+00> : vector<128x2xf32>
      %45 = tpu.matmul %43, %44, %cst_31 {dimension_numbers = #tpu.dot_dimension_numbers<[1], [0], [0], [1], [0, 0, 1, 1], [], []>} : vector<128x16xf32>, vector<16x2xf32>, vector<128x2xf32> -> vector<128x2xf32>
      %c0_32 = arith.constant 0 : index
      %c0_33 = arith.constant 0 : index
      %46 = vector.load %arg6[%c0_32, %c0_33] : memref<1x2xf32, #tpu.memory_space<vmem>>, vector<1x2xf32>
      %47 = vector.broadcast %46 : vector<1x2xf32> to vector<128x2xf32>
      %48 = arith.addf %45, %47 : vector<128x2xf32>
      %49 = arith.truncf %48 : vector<128x2xf32> to vector<128x2xbf16>
      %c0_34 = arith.constant 0 : index
      %c0_35 = arith.constant 0 : index
      %50 = vector.load %arg11[%c0_34, %c0_35] : memref<128x2xbf16, #tpu.memory_space<vmem>>, vector<128x2xbf16>
      tpu.vector_store %arg11[%c0_34, %c0_35], %49 {strides = array<i32>} : memref<128x2xbf16, #tpu.memory_space<vmem>>, vector<128x2xbf16>,
      %cst_36 = arith.constant 0xFF800000 : f32
      %51 = vector.broadcast %cst_36 : f32 to vector<128x1xf32>
      %c0_37 = arith.constant 0 : index
      %c0_38 = arith.constant 0 : index
      %52 = vector.load %arg13[%c0_37, %c0_38] : memref<128x1xf32, #tpu.memory_space<vmem>>, vector<128x1xf32>
      tpu.vector_store %arg13[%c0_37, %c0_38], %51 {strides = array<i32>} : memref<128x1xf32, #tpu.memory_space<vmem>>, vector<128x1xf32>,
      %cst_39 = arith.constant 0.000000e+00 : f32
      %53 = vector.broadcast %cst_39 : f32 to vector<128x1xf32>
      %c0_40 = arith.constant 0 : index
      %c0_41 = arith.constant 0 : index
      %54 = vector.load %arg14[%c0_40, %c0_41] : memref<128x1xf32, #tpu.memory_space<vmem>>, vector<128x1xf32>
      tpu.vector_store %arg14[%c0_40, %c0_41], %53 {strides = array<i32>} : memref<128x1xf32, #tpu.memory_space<vmem>>, vector<128x1xf32>,
      %cst_42 = arith.constant 0.000000e+00 : f32
      %55 = vector.broadcast %cst_42 : f32 to vector<128x16xf32>
      %c0_43 = arith.constant 0 : index
      %c0_44 = arith.constant 0 : index
      %56 = vector.load %arg12[%c0_43, %c0_44] : memref<128x16xf32, #tpu.memory_space<vmem>>, vector<128x16xf32>
      tpu.vector_store %arg12[%c0_43, %c0_44], %55 {strides = array<i32>} : memref<128x16xf32, #tpu.memory_space<vmem>>, vector<128x16xf32>,
    } else {
    }
    %c0 = arith.constant 0 : index
    %c0_1 = arith.constant 0 : index
    %c0_2 = arith.constant 0 : index
    %3 = vector.load %arg4[%c0, %c0_1, %c0_2] : memref<1x128x16xf32, #tpu.memory_space<vmem>>, vector<1x128x16xf32>
    %4 = vector.shape_cast %3 : vector<1x128x16xf32> to vector<128x16xf32>
    %c0_3 = arith.constant 0 : index
    %c0_4 = arith.constant 0 : index
    %5 = vector.load %arg7[%c0_3, %c0_4] : memref<16x18xf32, #tpu.memory_space<vmem>>, vector<16x18xf32>
    %cst = arith.constant dense<0.000000e+00> : vector<128x18xf32>
    %6 = tpu.matmul %4, %5, %cst {dimension_numbers = #tpu.dot_dimension_numbers<[1], [0], [0], [1], [0, 0, 1, 1], [], []>} : vector<128x16xf32>, vector<16x18xf32>, vector<128x18xf32> -> vector<128x18xf32>
    %c0_5 = arith.constant 0 : index
    %c0_6 = arith.constant 0 : index
    %7 = vector.load %arg8[%c0_5, %c0_6] : memref<1x18xf32, #tpu.memory_space<vmem>>, vector<1x18xf32>
    %8 = vector.broadcast %7 : vector<1x18xf32> to vector<128x18xf32>
    %9 = arith.addf %6, %8 : vector<128x18xf32>
    %10 = vector.extract_strided_slice %9 {offsets = [0, 0], sizes = [128, 16], strides = [1, 1]} : vector<128x18xf32> to vector<128x16xf32>
    %11 = arith.truncf %10 : vector<128x16xf32> to vector<128x16xbf16>
    %12 = vector.extract_strided_slice %9 {offsets = [0, 16], sizes = [128, 2], strides = [1, 1]} : vector<128x18xf32> to vector<128x2xf32>
    %13 = arith.truncf %12 : vector<128x2xf32> to vector<128x2xbf16>
    %c0_7 = arith.constant 0 : index
    %c0_8 = arith.constant 0 : index
    %14 = vector.load %arg11[%c0_7, %c0_8] : memref<128x2xbf16, #tpu.memory_space<vmem>>, vector<128x2xbf16>
    %cst_9 = arith.constant dense<0.000000e+00> : vector<128x128xf32>
    %15 = tpu.matmul %14, %13, %cst_9 {dimension_numbers = #tpu.dot_dimension_numbers<[1], [1], [0], [0], [0, 0, 1, 0], [], []>} : vector<128x2xbf16>, vector<128x2xbf16>, vector<128x128xf32> -> vector<128x128xf32>
    %c0_10 = arith.constant 0 : index
    %c0_11 = arith.constant 0 : index
    %16 = vector.load %arg13[%c0_10, %c0_11] : memref<128x1xf32, #tpu.memory_space<vmem>>, vector<128x1xf32>
    %cst_12 = arith.constant dense<0xFF800000> : vector<128xf32>
    %17 = vector.multi_reduction <maximumf>, %15, %cst_12 [1] : vector<128x128xf32> to vector<128xf32>
    %18 = vector.shape_cast %17 : vector<128xf32> to vector<128x1xf32>
    %19 = arith.maximumf %16, %18 : vector<128x1xf32>
    %20 = arith.subf %16, %19 : vector<128x1xf32>
    %21 = math.exp %20 : vector<128x1xf32>
    %22 = vector.broadcast %19 : vector<128x1xf32> to vector<128x128xf32>
    %23 = arith.subf %15, %22 : vector<128x128xf32>
    %24 = math.exp %23 : vector<128x128xf32>
    %c0_13 = arith.constant 0 : index
    %c0_14 = arith.constant 0 : index
    %25 = vector.load %arg14[%c0_13, %c0_14] : memref<128x1xf32, #tpu.memory_space<vmem>>, vector<128x1xf32>
    %26 = arith.mulf %21, %25 : vector<128x1xf32>
    %cst_15 = arith.constant dense<0.000000e+00> : vector<128xf32>
    %27 = vector.multi_reduction <add>, %24, %cst_15 [1] : vector<128x128xf32> to vector<128xf32>
    %28 = vector.shape_cast %27 : vector<128xf32> to vector<128x1xf32>
    %29 = arith.addf %26, %28 : vector<128x1xf32>
    %c0_16 = arith.constant 0 : index
    %c0_17 = arith.constant 0 : index
    %30 = vector.load %arg14[%c0_16, %c0_17] : memref<128x1xf32, #tpu.memory_space<vmem>>, vector<128x1xf32>
    tpu.vector_store %arg14[%c0_16, %c0_17], %29 {strides = array<i32>} : memref<128x1xf32, #tpu.memory_space<vmem>>, vector<128x1xf32>,
    %c0_18 = arith.constant 0 : index
    %c0_19 = arith.constant 0 : index
    %31 = vector.load %arg12[%c0_18, %c0_19] : memref<128x16xf32, #tpu.memory_space<vmem>>, vector<128x16xf32>
    %32 = vector.broadcast %21 : vector<128x1xf32> to vector<128x16xf32>
    %33 = arith.mulf %32, %31 : vector<128x16xf32>
    %34 = arith.truncf %24 : vector<128x128xf32> to vector<128x128xbf16>
    %cst_20 = arith.constant dense<0.000000e+00> : vector<128x16xf32>
    %35 = tpu.matmul %34, %11, %cst_20 {dimension_numbers = #tpu.dot_dimension_numbers<[1], [0], [0], [1], [0, 0, 1, 1], [], []>} : vector<128x128xbf16>, vector<128x16xbf16>, vector<128x16xf32> -> vector<128x16xf32>
    %36 = arith.addf %33, %35 : vector<128x16xf32>
    %c0_21 = arith.constant 0 : index
    %c0_22 = arith.constant 0 : index
    %37 = vector.load %arg12[%c0_21, %c0_22] : memref<128x16xf32, #tpu.memory_space<vmem>>, vector<128x16xf32>
    tpu.vector_store %arg12[%c0_21, %c0_22], %36 {strides = array<i32>} : memref<128x16xf32, #tpu.memory_space<vmem>>, vector<128x16xf32>,
    %c0_23 = arith.constant 0 : index
    %c0_24 = arith.constant 0 : index
    %38 = vector.load %arg13[%c0_23, %c0_24] : memref<128x1xf32, #tpu.memory_space<vmem>>, vector<128x1xf32>
    tpu.vector_store %arg13[%c0_23, %c0_24], %19 {strides = array<i32>} : memref<128x1xf32, #tpu.memory_space<vmem>>, vector<128x1xf32>,
    %c1_i32 = arith.constant 1 : i32
    %39 = arith.cmpi eq, %arg2, %c1_i32 : i32
    %40 = arith.extui %39 : i1 to i32
    %c0_i32_25 = arith.constant 0 : i32
    %41 = arith.cmpi ne, %40, %c0_i32_25 : i32
    scf.if %41 {
      %c0_26 = arith.constant 0 : index
      %42 = memref.load %arg9[%c0_26] : memref<1xf32, #tpu.memory_space<smem>>
      %c0_27 = arith.constant 0 : index
      %c0_28 = arith.constant 0 : index
      %43 = vector.load %arg14[%c0_27, %c0_28] : memref<128x1xf32, #tpu.memory_space<vmem>>, vector<128x1xf32>
      %44 = tpu.reciprocal %43 {approx = true} : vector<128x1xf32> -> vector<128x1xf32>
      %c0_29 = arith.constant 0 : index
      %c0_30 = arith.constant 0 : index
      %45 = vector.load %arg12[%c0_29, %c0_30] : memref<128x16xf32, #tpu.memory_space<vmem>>, vector<128x16xf32>
      %46 = vector.broadcast %44 : vector<128x1xf32> to vector<128x16xf32>
      %47 = arith.mulf %45, %46 : vector<128x16xf32>
      %48 = vector.broadcast %42 : f32 to vector<128x16xf32>
      %49 = arith.mulf %48, %47 : vector<128x16xf32>
      %c0_31 = arith.constant 0 : index
      %c0_32 = arith.constant 0 : index
      %c0_33 = arith.constant 0 : index
      %50 = vector.load %arg3[%c0_31, %c0_32, %c0_33] : memref<1x128x16xf32, #tpu.memory_space<vmem>>, vector<1x128x16xf32>
      %51 = vector.shape_cast %50 : vector<1x128x16xf32> to vector<128x16xf32>
      %52 = arith.addf %49, %51 : vector<128x16xf32>
      %c0_34 = arith.constant 0 : index
      %c0_35 = arith.constant 0 : index
      %c0_36 = arith.constant 0 : index
      %53 = vector.load %arg10[%c0_34, %c0_35, %c0_36] : memref<1x128x16xf32, #tpu.memory_space<vmem>>, vector<1x128x16xf32>
      %54 = vector.shape_cast %53 : vector<1x128x16xf32> to vector<128x16xf32>
      %55 = vector.shape_cast %52 : vector<128x16xf32> to vector<1x128x16xf32>
      tpu.vector_store %arg10[%c0_34, %c0_35, %c0_36], %55 {strides = array<i32>} : memref<1x128x16xf32, #tpu.memory_space<vmem>>, vector<1x128x16xf32>,
    } else {
    }
    return
  }
  func.func @transform_0(%arg0: i32, %arg1: i32, %arg2: i32) -> (i32, i32, i32) {
    %c0_i32 = arith.constant 0 : i32
    %c0_i32_0 = arith.constant 0 : i32
    return %arg0, %arg1, %c0_i32 : i32, i32, i32
  }
  func.func @transform_1(%arg0: i32, %arg1: i32, %arg2: i32) -> (i32, i32, i32) {
    %c0_i32 = arith.constant 0 : i32
    %c0_i32_0 = arith.constant 0 : i32
    return %arg0, %arg2, %c0_i32 : i32, i32, i32
  }
  func.func @transform_2(%arg0: i32, %arg1: i32, %arg2: i32) -> (i32, i32) {
    %c0_i32 = arith.constant 0 : i32
    %c0_i32_0 = arith.constant 0 : i32
    %c0_i32_1 = arith.constant 0 : i32
    return %c0_i32, %c0_i32_0 : i32, i32
  }
  func.func @transform_3(%arg0: i32, %arg1: i32, %arg2: i32) -> (i32, i32) {
    %c0_i32 = arith.constant 0 : i32
    %c0_i32_0 = arith.constant 0 : i32
    %c0_i32_1 = arith.constant 0 : i32
    return %c0_i32, %c0_i32_0 : i32, i32
  }
  func.func @transform_4(%arg0: i32, %arg1: i32, %arg2: i32) -> (i32, i32) {
    %c0_i32 = arith.constant 0 : i32
    %c0_i32_0 = arith.constant 0 : i32
    %c0_i32_1 = arith.constant 0 : i32
    return %c0_i32, %c0_i32_0 : i32, i32
  }
  func.func @transform_5(%arg0: i32, %arg1: i32, %arg2: i32) -> (i32, i32) {
    %c0_i32 = arith.constant 0 : i32
    %c0_i32_0 = arith.constant 0 : i32
    %c0_i32_1 = arith.constant 0 : i32
    return %c0_i32, %c0_i32_0 : i32, i32
  }
  func.func @transform_6(%arg0: i32, %arg1: i32, %arg2: i32) -> i32 {
    %c0_i32 = arith.constant 0 : i32
    %c0_i32_0 = arith.constant 0 : i32
    return %c0_i32 : i32
  }
  func.func @transform_7(%arg0: i32, %arg1: i32, %arg2: i32) -> (i32, i32, i32) {
    %c0_i32 = arith.constant 0 : i32
    %c0_i32_0 = arith.constant 0 : i32
    return %arg0, %arg1, %c0_i32 : i32, i32, i32
  }
}

</mosaic_0001>

<llo_original>
// kernel: tpu_custom_call.1
$region0: #{tpu_custom_call.1}
  #allocation0 [shape = 'u32[]', space=smem, size = 0x4, offset = 0x4, fixed_abs, tag = 'smem constant byte address 0x4 - core index']
  #allocation1 [shape = 'u32[72,128]{1,0:T(1,128)}', space=vmem, size = 0x9000, scoped, tag = 'internal scratch']
  #allocation2 [shape = 'bf16[128,2]{1,0:T(8,128)(2,1)}', space=vmem, size = 0x8000, scoped, tag = 'scratch operand']
  #allocation3 [shape = 'f32[128,16]{1,0:T(8,128)}', space=vmem, size = 0x10000, scoped, tag = 'scratch operand']
  #allocation4 [shape = 'f32[128,1]{1,0:T(8,128)}', space=vmem, size = 0x10000, scoped, tag = 'scratch operand']
  #allocation5 [shape = 'f32[128,1]{1,0:T(8,128)}', space=vmem, size = 0x10000, scoped, tag = 'scratch operand']
  #allocation6 [shape = 'f32[1]{0:T(128)S(6)}', space=smem, size = 0x200, scoped, tag = 'scoped memory for tpu_custom_call.1']
  %s0 = inlined_call_operand.vmem [shape: f32[2,256,16], index: 0, kind: input, shape index: {}]
  %s1 = inlined_call_operand.vmem [shape: f32[2,256,16], index: 1, kind: input, shape index: {}]
  %s2 = inlined_call_operand.vmem [shape: f32[16,2], index: 2, kind: input, shape index: {}]
  %s3 = inlined_call_operand.vmem [shape: f32[1,2], index: 3, kind: input, shape index: {}]
  %s4 = inlined_call_operand.vmem [shape: f32[16,18], index: 4, kind: input, shape index: {}]
  %s5 = inlined_call_operand.vmem [shape: f32[1,18], index: 5, kind: input, shape index: {}]
  %s6 = inlined_call_operand.<no memory space> [shape: f32[1], index: 6, kind: input, shape index: {}]
  %s7 = inlined_call_operand.vmem [shape: f32[2,256,16], index: 7, kind: output, shape index: {}]
  %s8 = sld [smem:[#allocation0]]
  $region69: #{tpu_custom_call.1} parent=0
    _
  %s10 = ssub.s32 1, %s8
  %s11 = scalar_select 0, %s10, %s8
  %12 = sst [smem:[#allocation6]] %s6
  loop: start=0, step=1, limit=10
  $region2: #{tpu_custom_call.1} parent=0 // loop_pre_header
    _
  $region3: #{tpu_custom_call.1} parent=0 // loop_header
    %s14 = sphi 0, %s18
    %p15 = scmp.ge.s32.totalorder %s14, 10
    %s21 = sphi 0, %s40
    %s22 = sphi 0, %s36
    %s23 = sphi 0, %s32
    %s24 = sphi 0, %s21
    %s25 = sphi 0, %s22
    %s26 = sphi 0, %s23
    %s27 = sphi 0, %s24
    %s28 = sphi 0, %s25
    %s29 = sphi 0, %s26
    %s45 = sphi 0, %s47
    %s48 = sphi 0, %s45
    %s49 = sphi 0, %s48
    %s65 = sphi 0, %s49
    %s73 = sphi 0, %s75
    %s76 = sphi 0, %s73
    %s77 = sphi 0, %s76
    %s93 = sphi 0, %s77
    %s97 = sphi 0, %s97
    %s99 = sphi 0, %s97
    %s100 = sphi 0, %s99
    %s114 = sphi 0, %s100
    %s118 = sphi 0, %s118
    %s120 = sphi 0, %s118
    %s121 = sphi 0, %s120
    %s135 = sphi 0, %s121
    %s139 = sphi 0, %s139
    %s141 = sphi 0, %s139
    %s142 = sphi 0, %s141
    %s156 = sphi 0, %s142
    %s160 = sphi 0, %s160
    %s162 = sphi 0, %s160
    %s163 = sphi 0, %s162
    %s177 = sphi 0, %s163
    %s181 = sphi 0, %s181
    %s183 = sphi 0, %s181
    %s184 = sphi 0, %s183
    %s198 = sphi 0, %s184
    %s206 = sphi 0, %s208
    %s209 = sphi 0, %s206
    %s210 = sphi 0, %s209
    %s226 = sphi 0, %s210
  $region4: #{tpu_custom_call.1} parent=0 // loop_header_branch
    %17 = sbr.rel (%p15) target = $region8
  $region5: #{tpu_custom_call.1} parent=0 // loop_body
    %s19 = ssub.s32 %s14, 1
    %s20 = ssub.s32 %s14, 2
    %s30 = sadd.s32 1, %s23
    %p31 = scmp.ge.s32.totalorder %s30, 2
    %s32 = scalar_select %p31, 0, %s30
    %s33 = sadd.s32 1, %s22
    %s34 = scalar_select %p31, %s33, %s22
    %p35 = scmp.ge.s32.totalorder %s34, 2
    %s36 = scalar_select %p35, 0, %s34
    %s37 = sadd.s32 1, %s21
    %s38 = scalar_select %p35, %s37, %s21
    %p39 = scmp.ge.s32.totalorder %s38, 2
    %s40 = scalar_select %p39, 0, %s38
    %s41 = ssub.s32 %s21, %s40
    %s42 = ssub.s32 %s22, %s36
    %s43 = sor.u32 %s41, %s42
    %p44 = scmp.eq.s32.totalorder %s43, 0
    %s46 = sadd.s32 %s45, 1
    %s47 = scalar_select %p44, %s45, %s46
    %p50 = pneg %p44
    %p51 = scmp.eq.s32.totalorder %s14, 7
    %p52 = por %p50, %p51
    %p53 = scmp.ne.s32.totalorder %s45, %s48
    %p54 = scmp.eq.s32.totalorder %s14, 0
    %p55 = por %p53, %p54
    %p56 = scmp.ne.s32.totalorder %s45, %s48
    %p57 = scmp.eq.s32.totalorder %s19, 7
    %p58 = por %p56, %p57
    %p59 = scmp.ne.s32.totalorder %s48, %s49
    %p60 = scmp.eq.s32.totalorder %s19, 0
    %p61 = por %p59, %p60
    %p62 = scmp.ne.s32.totalorder %s48, %s49
    %p63 = scmp.eq.s32.totalorder %s20, 7
    %p64 = por %p62, %p63
    %p66 = scmp.ne.s32.totalorder %s49, %s65
    %p67 = scmp.eq.s32.totalorder %s20, 0
    %p68 = por %p66, %p67
    %s69 = ssub.s32 %s21, %s40
    %s70 = ssub.s32 %s23, %s32
    %s71 = sor.u32 %s69, %s70
    %p72 = scmp.eq.s32.totalorder %s71, 0
    %s74 = sadd.s32 %s73, 1
    %s75 = scalar_select %p72, %s73, %s74
    %p78 = pneg %p72
    %p79 = scmp.eq.s32.totalorder %s14, 7
    %p80 = por %p78, %p79
    %p81 = scmp.ne.s32.totalorder %s73, %s76
    %p82 = scmp.eq.s32.totalorder %s14, 0
    %p83 = por %p81, %p82
    %p84 = scmp.ne.s32.totalorder %s73, %s76
    %p85 = scmp.eq.s32.totalorder %s19, 7
    %p86 = por %p84, %p85
    %p87 = scmp.ne.s32.totalorder %s76, %s77
    %p88 = scmp.eq.s32.totalorder %s19, 0
    %p89 = por %p87, %p88
    %p90 = scmp.ne.s32.totalorder %s76, %s77
    %p91 = scmp.eq.s32.totalorder %s20, 7
    %p92 = por %p90, %p91
    %p94 = scmp.ne.s32.totalorder %s77, %s93
    %p95 = scmp.eq.s32.totalorder %s20, 0
    %p96 = por %p94, %p95
    %s98 = sadd.s32 %s97, 1
    %p101 = scmp.eq.s32.totalorder %s14, 7
    %p102 = scmp.ne.s32.totalorder %s97, %s99
    %p103 = scmp.eq.s32.totalorder %s14, 0
    %p104 = por %p102, %p103
    %p105 = scmp.ne.s32.totalorder %s97, %s99
    %p106 = scmp.eq.s32.totalorder %s19, 7
    %p107 = por %p105, %p106
    %p108 = scmp.ne.s32.totalorder %s99, %s100
    %p109 = scmp.eq.s32.totalorder %s19, 0
    %p110 = por %p108, %p109
    %p111 = scmp.ne.s32.totalorder %s99, %s100
    %p112 = scmp.eq.s32.totalorder %s20, 7
    %p113 = por %p111, %p112
    %p115 = scmp.ne.s32.totalorder %s100, %s114
    %p116 = scmp.eq.s32.totalorder %s20, 0
    %p117 = por %p115, %p116
    %s119 = sadd.s32 %s118, 1
    %p122 = scmp.eq.s32.totalorder %s14, 7
    %p123 = scmp.ne.s32.totalorder %s118, %s120
    %p124 = scmp.eq.s32.totalorder %s14, 0
    %p125 = por %p123, %p124
    %p126 = scmp.ne.s32.totalorder %s118, %s120
    %p127 = scmp.eq.s32.totalorder %s19, 7
    %p128 = por %p126, %p127
    %p129 = scmp.ne.s32.totalorder %s120, %s121
    %p130 = scmp.eq.s32.totalorder %s19, 0
    %p131 = por %p129, %p130
    %p132 = scmp.ne.s32.totalorder %s120, %s121
    %p133 = scmp.eq.s32.totalorder %s20, 7
    %p134 = por %p132, %p133
    %p136 = scmp.ne.s32.totalorder %s121, %s135
    %p137 = scmp.eq.s32.totalorder %s20, 0
    %p138 = por %p136, %p137
    %s140 = sadd.s32 %s139, 1
    %p143 = scmp.eq.s32.totalorder %s14, 7
    %p144 = scmp.ne.s32.totalorder %s139, %s141
    %p145 = scmp.eq.s32.totalorder %s14, 0
    %p146 = por %p144, %p145
    %p147 = scmp.ne.s32.totalorder %s139, %s141
    %p148 = scmp.eq.s32.totalorder %s19, 7
    %p149 = por %p147, %p148
    %p150 = scmp.ne.s32.totalorder %s141, %s142
    %p151 = scmp.eq.s32.totalorder %s19, 0
    %p152 = por %p150, %p151
    %p153 = scmp.ne.s32.totalorder %s141, %s142
    %p154 = scmp.eq.s32.totalorder %s20, 7
    %p155 = por %p153, %p154
    %p157 = scmp.ne.s32.totalorder %s142, %s156
    %p158 = scmp.eq.s32.totalorder %s20, 0
    %p159 = por %p157, %p158
    %s161 = sadd.s32 %s160, 1
    %p164 = scmp.eq.s32.totalorder %s14, 7
    %p165 = scmp.ne.s32.totalorder %s160, %s162
    %p166 = scmp.eq.s32.totalorder %s14, 0
    %p167 = por %p165, %p166
    %p168 = scmp.ne.s32.totalorder %s160, %s162
    %p169 = scmp.eq.s32.totalorder %s19, 7
    %p170 = por %p168, %p169
    %p171 = scmp.ne.s32.totalorder %s162, %s163
    %p172 = scmp.eq.s32.totalorder %s19, 0
    %p173 = por %p171, %p172
    %p174 = scmp.ne.s32.totalorder %s162, %s163
    %p175 = scmp.eq.s32.totalorder %s20, 7
    %p176 = por %p174, %p175
    %p178 = scmp.ne.s32.totalorder %s163, %s177
    %p179 = scmp.eq.s32.totalorder %s20, 0
    %p180 = por %p178, %p179
    %s182 = sadd.s32 %s181, 1
    %p185 = scmp.eq.s32.totalorder %s14, 7
    %p186 = scmp.ne.s32.totalorder %s181, %s183
    %p187 = scmp.eq.s32.totalorder %s14, 0
    %p188 = por %p186, %p187
    %p189 = scmp.ne.s32.totalorder %s181, %s183
    %p190 = scmp.eq.s32.totalorder %s19, 7
    %p191 = por %p189, %p190
    %p192 = scmp.ne.s32.totalorder %s183, %s184
    %p193 = scmp.eq.s32.totalorder %s19, 0
    %p194 = por %p192, %p193
    %p195 = scmp.ne.s32.totalorder %s183, %s184
    %p196 = scmp.eq.s32.totalorder %s20, 7
    %p197 = por %p195, %p196
    %p199 = scmp.ne.s32.totalorder %s184, %s198
    %p200 = scmp.eq.s32.totalorder %s20, 0
    %p201 = por %p199, %p200
    %s202 = ssub.s32 %s21, %s40
    %s203 = ssub.s32 %s22, %s36
    %s204 = sor.u32 %s202, %s203
    %p205 = scmp.eq.s32.totalorder %s204, 0
    %s207 = sadd.s32 %s206, 1
    %s208 = scalar_select %p205, %s206, %s207
    %p211 = pneg %p205
    %p212 = scmp.eq.s32.totalorder %s14, 7
    %p213 = por %p211, %p212
    %p214 = scmp.ne.s32.totalorder %s206, %s209
    %p215 = scmp.eq.s32.totalorder %s14, 0
    %p216 = por %p214, %p215
    %p217 = scmp.ne.s32.totalorder %s206, %s209
    %p218 = scmp.eq.s32.totalorder %s19, 7
    %p219 = por %p217, %p218
    %p220 = scmp.ne.s32.totalorder %s209, %s210
    %p221 = scmp.eq.s32.totalorder %s19, 0
    %p222 = por %p220, %p221
    %p223 = scmp.ne.s32.totalorder %s209, %s210
    %p224 = scmp.eq.s32.totalorder %s20, 7
    %p225 = por %p223, %p224
    %p227 = scmp.ne.s32.totalorder %s210, %s226
    %p228 = scmp.eq.s32.totalorder %s20, 0
    %p229 = por %p227, %p228
    %p230 = scmp.le.s32.totalorder 1, %s14
    %p231 = scmp.lt.s32.totalorder %s14, 9
    %p232 = pnand %p230, %p231
    %p233 = pneg %p232
    // Predicated region
    $region9: #{tpu_custom_call.1} parent=5 // pred_check
      _
    $region10: #{tpu_custom_call.1} parent=5 // pred_check_branch
      %235 = sbr.rel (%p232) target = $region12
    $region11: #{tpu_custom_call.1} parent=5 // pred_region
      %s236 = ssub.s32 %s14, 1
      // Predicated region
      $region13: #{tpu_custom_call.1} parent=11 // pred_check
        %p237 = pneg %p110
      $region14: #{tpu_custom_call.1} parent=11 // pred_check_branch
        %239 = sbr.rel (%p237) target = $region16
      $region15: #{tpu_custom_call.1} parent=11 // pred_region
        _
      $region16: #{tpu_custom_call.1} parent=11 // pred_fallthru
        _
      // Predicated region
      $region17: #{tpu_custom_call.1} parent=11 // pred_check
        %p240 = pneg %p131
      $region18: #{tpu_custom_call.1} parent=11 // pred_check_branch
        %242 = sbr.rel (%p240) target = $region20
      $region19: #{tpu_custom_call.1} parent=11 // pred_region
        _
      $region20: #{tpu_custom_call.1} parent=11 // pred_fallthru
        _
      // Predicated region
      $region21: #{tpu_custom_call.1} parent=11 // pred_check
        %p243 = pneg %p152
      $region22: #{tpu_custom_call.1} parent=11 // pred_check_branch
        %245 = sbr.rel (%p243) target = $region24
      $region23: #{tpu_custom_call.1} parent=11 // pred_region
        _
      $region24: #{tpu_custom_call.1} parent=11 // pred_fallthru
        _
      // Predicated region
      $region25: #{tpu_custom_call.1} parent=11 // pred_check
        %p246 = pneg %p173
      $region26: #{tpu_custom_call.1} parent=11 // pred_check_branch
        %248 = sbr.rel (%p246) target = $region28
      $region27: #{tpu_custom_call.1} parent=11 // pred_region
        _
      $region28: #{tpu_custom_call.1} parent=11 // pred_fallthru
        _
      // Predicated region
      $region29: #{tpu_custom_call.1} parent=11 // pred_check
        %p249 = pneg %p194
      $region30: #{tpu_custom_call.1} parent=11 // pred_check_branch
        %251 = sbr.rel (%p249) target = $region32
      $region31: #{tpu_custom_call.1} parent=11 // pred_region
        _
      $region32: #{tpu_custom_call.1} parent=11 // pred_fallthru
        _
    $region12: #{tpu_custom_call.1} parent=5 // pred_fallthru
      _
    %p252 = scmp.lt.s32.totalorder %s14, 8
    // Predicated region
    $region33: #{tpu_custom_call.1} parent=5 // pred_check
      %p253 = pneg %p252
    $region34: #{tpu_custom_call.1} parent=5 // pred_check_branch
      %255 = sbr.rel (%p253) target = $region36
    $region35: #{tpu_custom_call.1} parent=5 // pred_region
      // Predicated region
      $region37: #{tpu_custom_call.1} parent=35 // pred_check
        %p256 = pneg %p55
      $region38: #{tpu_custom_call.1} parent=35 // pred_check_branch
        %258 = sbr.rel (%p256) target = $region40
      $region39: #{tpu_custom_call.1} parent=35 // pred_region
        %s259 = smul.u32 16, %s22
        %p260 = scmp.lt.s32.totalorder %s21, 1
        %s261 = scalar_select %p260, %s21, 1
        %p262 = scmp.lt.s32.totalorder %s259, 31
        %s263 = scalar_select %p262, %s259, 31
        %s264 = smul.addr %s261, 32
        %s265 = sadd.s32 %s263, %s264
        %s266 = smul.addr %s265, 8
        %s267 = scalar_lea.vmem %s0, %s266
        %s268 = smul.u32 16, %s22
      $region40: #{tpu_custom_call.1} parent=35 // pred_fallthru
        _
      // Predicated region
      $region41: #{tpu_custom_call.1} parent=35 // pred_check
        %p269 = pneg %p83
      $region42: #{tpu_custom_call.1} parent=35 // pred_check_branch
        %271 = sbr.rel (%p269) target = $region44
      $region43: #{tpu_custom_call.1} parent=35 // pred_region
        %s272 = smul.u32 16, %s23
        %p273 = scmp.lt.s32.totalorder %s21, 1
        %s274 = scalar_select %p273, %s21, 1
        %p275 = scmp.lt.s32.totalorder %s272, 31
        %s276 = scalar_select %p275, %s272, 31
        %s277 = smul.addr %s274, 32
        %s278 = sadd.s32 %s276, %s277
        %s279 = smul.addr %s278, 8
        %s280 = scalar_lea.vmem %s1, %s279
        %s281 = smul.u32 16, %s23
      $region44: #{tpu_custom_call.1} parent=35 // pred_fallthru
        _
    $region36: #{tpu_custom_call.1} parent=5 // pred_fallthru
      _
    %p282 = scmp.le.s32.totalorder 1, %s14
    %p283 = scmp.lt.s32.totalorder %s14, 9
    %p284 = pnand %p282, %p283
    %p285 = pneg %p284
    // Predicated region
    $region45: #{tpu_custom_call.1} parent=5 // pred_check
      _
    $region46: #{tpu_custom_call.1} parent=5 // pred_check_branch
      %287 = sbr.rel (%p284) target = $region48
    $region47: #{tpu_custom_call.1} parent=5 // pred_region
      %s288 = ssub.s32 %s14, 1
      %s289 = smul.u32 16, %s25
      %p290 = scmp.lt.s32.totalorder %s24, 1
      %s291 = scalar_select %p290, %s24, 1
      %p292 = scmp.lt.s32.totalorder %s289, 31
      %s293 = scalar_select %p292, %s289, 31
      %s294 = smul.addr %s291, 32
      %s295 = sadd.s32 %s293, %s294
      %s296 = smul.addr %s295, 8
      %s297 = scalar_lea.vmem %s0, %s296
      %p298 = pneg %p61
      %p299 = pneg %p58
      %s300 = smul.u32 16, %s26
      %p301 = scmp.lt.s32.totalorder %s24, 1
      %s302 = scalar_select %p301, %s24, 1
      %p303 = scmp.lt.s32.totalorder %s300, 31
      %s304 = scalar_select %p303, %s300, 31
      %s305 = smul.addr %s302, 32
      %s306 = sadd.s32 %s304, %s305
      %s307 = smul.addr %s306, 8
      %s308 = scalar_lea.vmem %s1, %s307
      %p309 = pneg %p89
      %p310 = pneg %p86
      %p311 = pneg %p110
      %p312 = pneg %p107
      %p313 = pneg %p131
      %p314 = pneg %p128
      %p315 = pneg %p152
      %p316 = pneg %p149
      %p317 = pneg %p173
      %p318 = pneg %p170
      %p319 = pneg %p194
      %p320 = pneg %p191
      %p321 = pneg %p222
      %p322 = pneg %p219
      %s323 = smul.u32 16, %s25
      %p324 = scmp.lt.s32.totalorder %s24, 1
      %s325 = scalar_select %p324, %s24, 1
      %p326 = scmp.lt.s32.totalorder %s323, 31
      %s327 = scalar_select %p326, %s323, 31
      %s328 = smul.addr %s325, 32
      %s329 = sadd.s32 %s327, %s328
      %s330 = smul.addr %s329, 8
      %s331 = scalar_lea.vmem %s7, %s330
      %s332 = smul.u32 16, %s25
      %p333 = scmp.lt.s32.totalorder %s24, 1
      %s334 = scalar_select %p333, %s24, 1
      %p335 = scmp.lt.s32.totalorder %s332, 31
      %s336 = scalar_select %p335, %s332, 31
      %s337 = smul.addr %s334, 32
      %s338 = sadd.s32 %s336, %s337
      %s339 = smul.addr %s338, 8
      %s340 = scalar_lea.vmem %s0, %s339
      %s341 = smul.u32 16, %s25
      %s342 = smul.u32 16, %s26
      %p343 = scmp.lt.s32.totalorder %s24, 1
      %s344 = scalar_select %p343, %s24, 1
      %p345 = scmp.lt.s32.totalorder %s342, 31
      %s346 = scalar_select %p345, %s342, 31
      %s347 = smul.addr %s344, 32
      %s348 = sadd.s32 %s346, %s347
      %s349 = smul.addr %s348, 8
      %s350 = scalar_lea.vmem %s1, %s349
      %s351 = smul.u32 16, %s26
      %s352 = smul.u32 16, %s25
      %p353 = scmp.lt.s32.totalorder %s24, 1
      %s354 = scalar_select %p353, %s24, 1
      %p355 = scmp.lt.s32.totalorder %s352, 31
      %s356 = scalar_select %p355, %s352, 31
      %s357 = smul.addr %s354, 32
      %s358 = sadd.s32 %s356, %s357
      %s359 = smul.addr %s358, 8
      %s360 = scalar_lea.vmem %s7, %s359
      %s361 = smul.u32 16, %s25
      %p362 = scmp.eq.s32.totalorder %s26, 0
      // Predicated region
      $region49: #{tpu_custom_call.1} parent=47 // pred_check
        %p363 = pneg %p362
      $region50: #{tpu_custom_call.1} parent=47 // pred_check_branch
        %365 = sbr.rel (%p363) target = $region52
      $region51: #{tpu_custom_call.1} parent=47 // pred_region
        %v366 = vld [vmem:[%s340] sm:$0xff]
        %v367 = vld [vmem:[%s340 + $0x8] sm:$0xff]
        %v368 = vld [vmem:[%s340 + $0x10] sm:$0xff]
        %v369 = vld [vmem:[%s340 + $0x18] sm:$0xff]
        %v370 = vld [vmem:[%s340 + $0x20] sm:$0xff]
        %v371 = vld [vmem:[%s340 + $0x28] sm:$0xff]
        %v372 = vld [vmem:[%s340 + $0x30] sm:$0xff]
        %v373 = vld [vmem:[%s340 + $0x38] sm:$0xff]
        %v374 = vld [vmem:[%s340 + $0x40] sm:$0xff]
        %v375 = vld [vmem:[%s340 + $0x48] sm:$0xff]
        %v376 = vld [vmem:[%s340 + $0x50] sm:$0xff]
        %v377 = vld [vmem:[%s340 + $0x58] sm:$0xff]
        %v378 = vld [vmem:[%s340 + $0x60] sm:$0xff]
        %v379 = vld [vmem:[%s340 + $0x68] sm:$0xff]
        %v380 = vld [vmem:[%s340 + $0x70] sm:$0xff]
        %v381 = vld [vmem:[%s340 + $0x78] sm:$0xff]
        %v382 = vld [vmem:[%s2] sm:$0xff]
        %v383 = vld [vmem:[%s2 + $0x8] sm:$0xff]
        %v384 = vld [vmem:[%s3] sm:$0x1]
        %v386 = vperm.slane %v384, 0
        %vm388 = vcmask 130048
        %v390 = vsel %vm388, %v366, 0
        %v393 = vsel %vm388, %v367, 0
        %v396 = vsel %vm388, %v368, 0
        %v399 = vsel %vm388, %v369, 0
        %v402 = vsel %vm388, %v370, 0
        %v405 = vsel %vm388, %v371, 0
        %v408 = vsel %vm388, %v372, 0
        %v411 = vsel %vm388, %v373, 0
        %v414 = vsel %vm388, %v374, 0
        %v417 = vsel %vm388, %v375, 0
        %v420 = vsel %vm388, %v376, 0
        %v423 = vsel %vm388, %v377, 0
        %v426 = vsel %vm388, %v378, 0
        %v429 = vsel %vm388, %v379, 0
        %v432 = vsel %vm388, %v380, 0
        %v435 = vsel %vm388, %v381, 0
        %437 = vmatpush.msra.mxu0 0.0
        %438 = vmatpush.msra.mxu0 0.0
        %439 = vmatpush.msra.mxu0 0.0
        %440 = vmatpush.msra.mxu0 0.0
        %441 = vmatpush.msra.mxu0 0.0
        %442 = vmatpush.msra.mxu0 0.0
        %443 = vmatpush.msra.mxu0 0.0
        %444 = vmatpush.msra.mxu0 0.0
        %445 = vmatpush.msra.mxu0 0.0
        %446 = vmatpush.msra.mxu0 0.0
        %447 = vmatpush.msra.mxu0 0.0
        %448 = vmatpush.msra.mxu0 0.0
        %449 = vmatpush.msra.mxu0 0.0
        %450 = vmatpush.msra.mxu0 0.0
        %451 = vmatpush.msra.mxu0 %v383
        %452 = vmatpush.msra.mxu0 %v382
        %453 = vmatmul.f32.gmra.mxu0 %v390
        %v454 = vpop.f32.mrf.mxu0
        %v455 = vadd.f32 %v386, %v454
        %456 = vmatmul.f32.gmra.mxu0 %v393
        %v457 = vpop.f32.mrf.mxu0
        %v458 = vadd.f32 %v386, %v457
        %459 = vmatmul.f32.gmra.mxu0 %v396
        %v460 = vpop.f32.mrf.mxu0
        %v461 = vadd.f32 %v386, %v460
        %462 = vmatmul.f32.gmra.mxu0 %v399
        %v463 = vpop.f32.mrf.mxu0
        %v464 = vadd.f32 %v386, %v463
        %465 = vmatmul.f32.gmra.mxu0 %v402
        %v466 = vpop.f32.mrf.mxu0
        %v467 = vadd.f32 %v386, %v466
        %468 = vmatmul.f32.gmra.mxu0 %v405
        %v469 = vpop.f32.mrf.mxu0
        %v470 = vadd.f32 %v386, %v469
        %471 = vmatmul.f32.gmra.mxu0 %v408
        %v472 = vpop.f32.mrf.mxu0
        %v473 = vadd.f32 %v386, %v472
        %474 = vmatmul.f32.gmra.mxu0 %v411
        %v475 = vpop.f32.mrf.mxu0
        %v476 = vadd.f32 %v386, %v475
        %477 = vmatmul.f32.gmra.mxu0 %v414
        %v478 = vpop.f32.mrf.mxu0
        %v479 = vadd.f32 %v386, %v478
        %480 = vmatmul.f32.gmra.mxu0 %v417
        %v481 = vpop.f32.mrf.mxu0
        %v482 = vadd.f32 %v386, %v481
        %483 = vmatmul.f32.gmra.mxu0 %v420
        %v484 = vpop.f32.mrf.mxu0
        %v485 = vadd.f32 %v386, %v484
        %486 = vmatmul.f32.gmra.mxu0 %v423
        %v487 = vpop.f32.mrf.mxu0
        %v488 = vadd.f32 %v386, %v487
        %489 = vmatmul.f32.gmra.mxu0 %v426
        %v490 = vpop.f32.mrf.mxu0
        %v491 = vadd.f32 %v386, %v490
        %492 = vmatmul.f32.gmra.mxu0 %v429
        %v493 = vpop.f32.mrf.mxu0
        %v494 = vadd.f32 %v386, %v493
        %495 = vmatmul.f32.gmra.mxu0 %v432
        %v496 = vpop.f32.mrf.mxu0
        %v497 = vadd.f32 %v386, %v496
        %498 = vmatmul.f32.gmra.mxu0 %v435
        %v499 = vpop.f32.mrf.mxu0
        %v500 = vadd.f32 %v386, %v499
        %501 = vdwg.mxu0
        %v502 = vpack.c.bf16 %v455, %v455
        %v503 = vpack.c.bf16 %v458, %v458
        %v504 = vpack.c.bf16 %v461, %v461
        %v505 = vpack.c.bf16 %v464, %v464
        %v506 = vpack.c.bf16 %v467, %v467
        %v507 = vpack.c.bf16 %v470, %v470
        %v508 = vpack.c.bf16 %v473, %v473
        %v509 = vpack.c.bf16 %v476, %v476
        %v510 = vpack.c.bf16 %v479, %v479
        %v511 = vpack.c.bf16 %v482, %v482
        %v512 = vpack.c.bf16 %v485, %v485
        %v513 = vpack.c.bf16 %v488, %v488
        %v514 = vpack.c.bf16 %v491, %v491
        %v515 = vpack.c.bf16 %v494, %v494
        %v516 = vpack.c.bf16 %v497, %v497
        %v517 = vpack.c.bf16 %v500, %v500
        %vm518 = vcmask 11264
        %519 = vst.msk [vmem:[#allocation2] sm:$0xf] %vm518, %v502
        %520 = vst.msk [vmem:[#allocation2 + $0x4] sm:$0xf] %vm518, %v503
        %521 = vst.msk [vmem:[#allocation2 + $0x8] sm:$0xf] %vm518, %v504
        %522 = vst.msk [vmem:[#allocation2 + $0xc] sm:$0xf] %vm518, %v505
        %523 = vst.msk [vmem:[#allocation2 + $0x10] sm:$0xf] %vm518, %v506
        %524 = vst.msk [vmem:[#allocation2 + $0x14] sm:$0xf] %vm518, %v507
        %525 = vst.msk [vmem:[#allocation2 + $0x18] sm:$0xf] %vm518, %v508
        %526 = vst.msk [vmem:[#allocation2 + $0x1c] sm:$0xf] %vm518, %v509
        %527 = vst.msk [vmem:[#allocation2 + $0x20] sm:$0xf] %vm518, %v510
        %528 = vst.msk [vmem:[#allocation2 + $0x24] sm:$0xf] %vm518, %v511
        %529 = vst.msk [vmem:[#allocation2 + $0x28] sm:$0xf] %vm518, %v512
        %530 = vst.msk [vmem:[#allocation2 + $0x2c] sm:$0xf] %vm518, %v513
        %531 = vst.msk [vmem:[#allocation2 + $0x30] sm:$0xf] %vm518, %v514
        %532 = vst.msk [vmem:[#allocation2 + $0x34] sm:$0xf] %vm518, %v515
        %533 = vst.msk [vmem:[#allocation2 + $0x38] sm:$0xf] %vm518, %v516
        %534 = vst.msk [vmem:[#allocation2 + $0x3c] sm:$0xf] %vm518, %v517
        %vm535 = vcmask 7168
        %536 = vst.msk [vmem:[#allocation4] sm:$0xff] %vm535, -inf
        %537 = vst.msk [vmem:[#allocation4 + $0x8] sm:$0xff] %vm535, -inf
        %538 = vst.msk [vmem:[#allocation4 + $0x10] sm:$0xff] %vm535, -inf
        %539 = vst.msk [vmem:[#allocation4 + $0x18] sm:$0xff] %vm535, -inf
        %540 = vst.msk [vmem:[#allocation4 + $0x20] sm:$0xff] %vm535, -inf
        %541 = vst.msk [vmem:[#allocation4 + $0x28] sm:$0xff] %vm535, -inf
        %542 = vst.msk [vmem:[#allocation4 + $0x30] sm:$0xff] %vm535, -inf
        %543 = vst.msk [vmem:[#allocation4 + $0x38] sm:$0xff] %vm535, -inf
        %544 = vst.msk [vmem:[#allocation4 + $0x40] sm:$0xff] %vm535, -inf
        %545 = vst.msk [vmem:[#allocation4 + $0x48] sm:$0xff] %vm535, -inf
        %546 = vst.msk [vmem:[#allocation4 + $0x50] sm:$0xff] %vm535, -inf
        %547 = vst.msk [vmem:[#allocation4 + $0x58] sm:$0xff] %vm535, -inf
        %548 = vst.msk [vmem:[#allocation4 + $0x60] sm:$0xff] %vm535, -inf
        %549 = vst.msk [vmem:[#allocation4 + $0x68] sm:$0xff] %vm535, -inf
        %550 = vst.msk [vmem:[#allocation4 + $0x70] sm:$0xff] %vm535, -inf
        %551 = vst.msk [vmem:[#allocation4 + $0x78] sm:$0xff] %vm535, -inf
        %552 = vst.msk [vmem:[#allocation5] sm:$0xff] %vm535, 0.0
        %553 = vst.msk [vmem:[#allocation5 + $0x8] sm:$0xff] %vm535, 0.0
        %554 = vst.msk [vmem:[#allocation5 + $0x10] sm:$0xff] %vm535, 0.0
        %555 = vst.msk [vmem:[#allocation5 + $0x18] sm:$0xff] %vm535, 0.0
        %556 = vst.msk [vmem:[#allocation5 + $0x20] sm:$0xff] %vm535, 0.0
        %557 = vst.msk [vmem:[#allocation5 + $0x28] sm:$0xff] %vm535, 0.0
        %558 = vst.msk [vmem:[#allocation5 + $0x30] sm:$0xff] %vm535, 0.0
        %559 = vst.msk [vmem:[#allocation5 + $0x38] sm:$0xff] %vm535, 0.0
        %560 = vst.msk [vmem:[#allocation5 + $0x40] sm:$0xff] %vm535, 0.0
        %561 = vst.msk [vmem:[#allocation5 + $0x48] sm:$0xff] %vm535, 0.0
        %562 = vst.msk [vmem:[#allocation5 + $0x50] sm:$0xff] %vm535, 0.0
        %563 = vst.msk [vmem:[#allocation5 + $0x58] sm:$0xff] %vm535, 0.0
        %564 = vst.msk [vmem:[#allocation5 + $0x60] sm:$0xff] %vm535, 0.0
        %565 = vst.msk [vmem:[#allocation5 + $0x68] sm:$0xff] %vm535, 0.0
        %566 = vst.msk [vmem:[#allocation5 + $0x70] sm:$0xff] %vm535, 0.0
        %567 = vst.msk [vmem:[#allocation5 + $0x78] sm:$0xff] %vm535, 0.0
        %568 = vst.msk [vmem:[#allocation3] sm:$0xff] %vm388, 0.0
        %569 = vst.msk [vmem:[#allocation3 + $0x8] sm:$0xff] %vm388, 0.0
        %570 = vst.msk [vmem:[#allocation3 + $0x10] sm:$0xff] %vm388, 0.0
        %571 = vst.msk [vmem:[#allocation3 + $0x18] sm:$0xff] %vm388, 0.0
        %572 = vst.msk [vmem:[#allocation3 + $0x20] sm:$0xff] %vm388, 0.0
        %573 = vst.msk [vmem:[#allocation3 + $0x28] sm:$0xff] %vm388, 0.0
        %574 = vst.msk [vmem:[#allocation3 + $0x30] sm:$0xff] %vm388, 0.0
        %575 = vst.msk [vmem:[#allocation3 + $0x38] sm:$0xff] %vm388, 0.0
        %576 = vst.msk [vmem:[#allocation3 + $0x40] sm:$0xff] %vm388, 0.0
        %577 = vst.msk [vmem:[#allocation3 + $0x48] sm:$0xff] %vm388, 0.0
        %578 = vst.msk [vmem:[#allocation3 + $0x50] sm:$0xff] %vm388, 0.0
        %579 = vst.msk [vmem:[#allocation3 + $0x58] sm:$0xff] %vm388, 0.0
        %580 = vst.msk [vmem:[#allocation3 + $0x60] sm:$0xff] %vm388, 0.0
        %581 = vst.msk [vmem:[#allocation3 + $0x68] sm:$0xff] %vm388, 0.0
        %582 = vst.msk [vmem:[#allocation3 + $0x70] sm:$0xff] %vm388, 0.0
        %583 = vst.msk [vmem:[#allocation3 + $0x78] sm:$0xff] %vm388, 0.0
      $region52: #{tpu_custom_call.1} parent=47 // pred_fallthru
        _
      %v584 = vld [vmem:[%s350] sm:$0xff]
      %v585 = vld [vmem:[%s350 + $0x8] sm:$0xff]
      %v586 = vld [vmem:[%s350 + $0x10] sm:$0xff]
      %v587 = vld [vmem:[%s350 + $0x18] sm:$0xff]
      %v588 = vld [vmem:[%s350 + $0x20] sm:$0xff]
      %v589 = vld [vmem:[%s350 + $0x28] sm:$0xff]
      %v590 = vld [vmem:[%s350 + $0x30] sm:$0xff]
      %v591 = vld [vmem:[%s350 + $0x38] sm:$0xff]
      %v592 = vld [vmem:[%s350 + $0x40] sm:$0xff]
      %v593 = vld [vmem:[%s350 + $0x48] sm:$0xff]
      %v594 = vld [vmem:[%s350 + $0x50] sm:$0xff]
      %v595 = vld [vmem:[%s350 + $0x58] sm:$0xff]
      %v596 = vld [vmem:[%s350 + $0x60] sm:$0xff]
      %v597 = vld [vmem:[%s350 + $0x68] sm:$0xff]
      %v598 = vld [vmem:[%s350 + $0x70] sm:$0xff]
      %v599 = vld [vmem:[%s350 + $0x78] sm:$0xff]
      %v600 = vld [vmem:[%s4] sm:$0xff]
      %v601 = vld [vmem:[%s4 + $0x8] sm:$0xff]
      %v602 = vld [vmem:[%s5] sm:$0x1]
      %v604 = vperm.slane %v602, 0
      %vm606 = vcmask 130048
      %v608 = vsel %vm606, %v584, 0
      %v611 = vsel %vm606, %v585, 0
      %v614 = vsel %vm606, %v586, 0
      %v617 = vsel %vm606, %v587, 0
      %v620 = vsel %vm606, %v588, 0
      %v623 = vsel %vm606, %v589, 0
      %v626 = vsel %vm606, %v590, 0
      %v629 = vsel %vm606, %v591, 0
      %v632 = vsel %vm606, %v592, 0
      %v635 = vsel %vm606, %v593, 0
      %v638 = vsel %vm606, %v594, 0
      %v641 = vsel %vm606, %v595, 0
      %v644 = vsel %vm606, %v596, 0
      %v647 = vsel %vm606, %v597, 0
      %v650 = vsel %vm606, %v598, 0
      %v653 = vsel %vm606, %v599, 0
      %655 = vmatpush.msra.mxu0 0.0
      %656 = vmatpush.msra.mxu0 0.0
      %657 = vmatpush.msra.mxu0 0.0
      %658 = vmatpush.msra.mxu0 0.0
      %659 = vmatpush.msra.mxu0 0.0
      %660 = vmatpush.msra.mxu0 0.0
      %661 = vmatpush.msra.mxu0 0.0
      %662 = vmatpush.msra.mxu0 0.0
      %663 = vmatpush.msra.mxu0 0.0
      %664 = vmatpush.msra.mxu0 0.0
      %665 = vmatpush.msra.mxu0 0.0
      %666 = vmatpush.msra.mxu0 0.0
      %667 = vmatpush.msra.mxu0 0.0
      %668 = vmatpush.msra.mxu0 0.0
      %669 = vmatpush.msra.mxu0 %v601
      %670 = vmatpush.msra.mxu0 %v600
      %671 = vmatmul.f32.gmra.mxu0 %v608
      %v672 = vpop.f32.mrf.mxu0
      %v673 = vadd.f32 %v604, %v672
      %674 = vmatmul.f32.gmra.mxu0 %v611
      %v675 = vpop.f32.mrf.mxu0
      %v676 = vadd.f32 %v604, %v675
      %677 = vmatmul.f32.gmra.mxu0 %v614
      %v678 = vpop.f32.mrf.mxu0
      %v679 = vadd.f32 %v604, %v678
      %680 = vmatmul.f32.gmra.mxu0 %v617
      %v681 = vpop.f32.mrf.mxu0
      %v682 = vadd.f32 %v604, %v681
      %683 = vmatmul.f32.gmra.mxu0 %v620
      %v684 = vpop.f32.mrf.mxu0
      %v685 = vadd.f32 %v604, %v684
      %686 = vmatmul.f32.gmra.mxu0 %v623
      %v687 = vpop.f32.mrf.mxu0
      %v688 = vadd.f32 %v604, %v687
      %689 = vmatmul.f32.gmra.mxu0 %v626
      %v690 = vpop.f32.mrf.mxu0
      %v691 = vadd.f32 %v604, %v690
      %692 = vmatmul.f32.gmra.mxu0 %v629
      %v693 = vpop.f32.mrf.mxu0
      %v694 = vadd.f32 %v604, %v693
      %695 = vmatmul.f32.gmra.mxu0 %v632
      %v696 = vpop.f32.mrf.mxu0
      %v697 = vadd.f32 %v604, %v696
      %698 = vmatmul.f32.gmra.mxu0 %v635
      %v699 = vpop.f32.mrf.mxu0
      %v700 = vadd.f32 %v604, %v699
      %701 = vmatmul.f32.gmra.mxu0 %v638
      %v702 = vpop.f32.mrf.mxu0
      %v703 = vadd.f32 %v604, %v702
      %704 = vmatmul.f32.gmra.mxu0 %v641
      %v705 = vpop.f32.mrf.mxu0
      %v706 = vadd.f32 %v604, %v705
      %707 = vmatmul.f32.gmra.mxu0 %v644
      %v708 = vpop.f32.mrf.mxu0
      %v709 = vadd.f32 %v604, %v708
      %710 = vmatmul.f32.gmra.mxu0 %v647
      %v711 = vpop.f32.mrf.mxu0
      %v712 = vadd.f32 %v604, %v711
      %713 = vmatmul.f32.gmra.mxu0 %v650
      %v714 = vpop.f32.mrf.mxu0
      %v715 = vadd.f32 %v604, %v714
      %716 = vmatmul.f32.gmra.mxu0 %v653
      %v717 = vpop.f32.mrf.mxu0
      %v718 = vadd.f32 %v604, %v717
      %719 = vdwg.mxu0
      %v720 = vpack.c.bf16 %v676, %v673
      %v721 = vpack.c.bf16 %v682, %v679
      %v722 = vpack.c.bf16 %v688, %v685
      %v723 = vpack.c.bf16 %v694, %v691
      %v724 = vpack.c.bf16 %v700, %v697
      %v725 = vpack.c.bf16 %v706, %v703
      %v726 = vpack.c.bf16 %v712, %v709
      %v727 = vpack.c.bf16 %v718, %v715
      %v728 = vld [vmem:[#allocation2] sm:$0xf]
      %v729 = vld [vmem:[#allocation2 + $0x4] sm:$0xf]
      %v730 = vld [vmem:[#allocation2 + $0x8] sm:$0xf]
      %v731 = vld [vmem:[#allocation2 + $0xc] sm:$0xf]
      %v732 = vld [vmem:[#allocation2 + $0x10] sm:$0xf]
      %v733 = vld [vmem:[#allocation2 + $0x14] sm:$0xf]
      %v734 = vld [vmem:[#allocation2 + $0x18] sm:$0xf]
      %v735 = vld [vmem:[#allocation2 + $0x1c] sm:$0xf]
      %v736 = vld [vmem:[#allocation2 + $0x20] sm:$0xf]
      %v737 = vld [vmem:[#allocation2 + $0x24] sm:$0xf]
      %v738 = vld [vmem:[#allocation2 + $0x28] sm:$0xf]
      %v739 = vld [vmem:[#allocation2 + $0x2c] sm:$0xf]
      %v740 = vld [vmem:[#allocation2 + $0x30] sm:$0xf]
      %v741 = vld [vmem:[#allocation2 + $0x34] sm:$0xf]
      %v742 = vld [vmem:[#allocation2 + $0x38] sm:$0xf]
      %v743 = vld [vmem:[#allocation2 + $0x3c] sm:$0xf]
      %v760 = vunpack.c.l.b16 %v728
      %v761 = vunpack.c.l.b16 %v729
      %v762 = vunpack.c.l.b16 %v730
      %v763 = vunpack.c.l.b16 %v731
      %v764 = vunpack.c.l.b16 %v732
      %v765 = vunpack.c.l.b16 %v733
      %v766 = vunpack.c.l.b16 %v734
      %v767 = vunpack.c.l.b16 %v735
      %v768 = vunpack.c.l.b16 %v736
      %v769 = vunpack.c.l.b16 %v737
      %v770 = vunpack.c.l.b16 %v738
      %v771 = vunpack.c.l.b16 %v739
      %v772 = vunpack.c.l.b16 %v740
      %v773 = vunpack.c.l.b16 %v741
      %v774 = vunpack.c.l.b16 %v742
      %v775 = vunpack.c.l.b16 %v743
      %v776 = vpack.c.b16 %v761, %v760
      %v777 = vpack.c.b16 %v763, %v762
      %v778 = vpack.c.b16 %v765, %v764
      %v779 = vpack.c.b16 %v767, %v766
      %v780 = vpack.c.b16 %v769, %v768
      %v781 = vpack.c.b16 %v771, %v770
      %v782 = vpack.c.b16 %v773, %v772
      %v783 = vpack.c.b16 %v775, %v774
      %792 = vrot.lane.b32.xlu0 %v720, 112
      %v793 = vpop.permute.xlu0 %792
      %794 = vrot.lane.b32.xlu0 %v721, 112
      %v795 = vpop.permute.xlu0 %794
      %796 = vrot.lane.b32.xlu0 %v722, 112
      %v797 = vpop.permute.xlu0 %796
      %798 = vrot.lane.b32.xlu0 %v723, 112
      %v799 = vpop.permute.xlu0 %798
      %800 = vrot.lane.b32.xlu0 %v724, 112
      %v801 = vpop.permute.xlu0 %800
      %802 = vrot.lane.b32.xlu0 %v725, 112
      %v803 = vpop.permute.xlu0 %802
      %804 = vrot.lane.b32.xlu0 %v726, 112
      %v805 = vpop.permute.xlu0 %804
      %806 = vrot.lane.b32.xlu0 %v727, 112
      %v807 = vpop.permute.xlu0 %806
      %vm808 = vcmask 15360
      %v810 = vsel %vm808, %v776, 0
      %v813 = vsel %vm808, %v777, 0
      %v816 = vsel %vm808, %v778, 0
      %v819 = vsel %vm808, %v779, 0
      %v822 = vsel %vm808, %v780, 0
      %v825 = vsel %vm808, %v781, 0
      %v828 = vsel %vm808, %v782, 0
      %v831 = vsel %vm808, %v783, 0
      %v834 = vsel %vm808, %v793, 0
      %v837 = vsel %vm808, %v795, 0
      %v840 = vsel %vm808, %v797, 0
      %v843 = vsel %vm808, %v799, 0
      %v846 = vsel %vm808, %v801, 0
      %v849 = vsel %vm808, %v803, 0
      %v852 = vsel %vm808, %v805, 0
      %v855 = vsel %vm808, %v807, 0
      %857 = vmatpush.bf16.xpose.msra.mxu0 %v855
      %858 = vmatpush.bf16.xpose.msra.mxu0 %v852
      %859 = vmatpush.bf16.xpose.msra.mxu0 %v849
      %860 = vmatpush.bf16.xpose.msra.mxu0 %v846
      %861 = vmatpush.bf16.xpose.msra.mxu0 %v843
      %862 = vmatpush.bf16.xpose.msra.mxu0 %v840
      %863 = vmatpush.bf16.xpose.msra.mxu0 %v837
      %864 = vmatpush.bf16.xpose.msra.mxu0 %v834
      %865 = vmatmul.bf16.gmra.mxu0 %v810
      %v866 = vpop.f32.mrf.mxu0
      %v867 = vadd.f32 0.0, %v866
      %v868 = vpop.f32.mrf.mxu0
      %v869 = vadd.f32 0.0, %v868
      %870 = vmatmul.bf16.gmra.mxu0 %v813
      %v871 = vpop.f32.mrf.mxu0
      %v872 = vadd.f32 0.0, %v871
      %v873 = vpop.f32.mrf.mxu0
      %v874 = vadd.f32 0.0, %v873
      %875 = vmatmul.bf16.gmra.mxu0 %v816
      %v876 = vpop.f32.mrf.mxu0
      %v877 = vadd.f32 0.0, %v876
      %v878 = vpop.f32.mrf.mxu0
      %v879 = vadd.f32 0.0, %v878
      %880 = vmatmul.bf16.gmra.mxu0 %v819
      %v881 = vpop.f32.mrf.mxu0
      %v882 = vadd.f32 0.0, %v881
      %v883 = vpop.f32.mrf.mxu0
      %v884 = vadd.f32 0.0, %v883
      %885 = vmatmul.bf16.gmra.mxu0 %v822
      %v886 = vpop.f32.mrf.mxu0
      %v887 = vadd.f32 0.0, %v886
      %v888 = vpop.f32.mrf.mxu0
      %v889 = vadd.f32 0.0, %v888
      %890 = vmatmul.bf16.gmra.mxu0 %v825
      %v891 = vpop.f32.mrf.mxu0
      %v892 = vadd.f32 0.0, %v891
      %v893 = vpop.f32.mrf.mxu0
      %v894 = vadd.f32 0.0, %v893
      %895 = vmatmul.bf16.gmra.mxu0 %v828
      %v896 = vpop.f32.mrf.mxu0
      %v897 = vadd.f32 0.0, %v896
      %v898 = vpop.f32.mrf.mxu0
      %v899 = vadd.f32 0.0, %v898
      %900 = vmatmul.bf16.gmra.mxu0 %v831
      %v901 = vpop.f32.mrf.mxu0
      %v902 = vadd.f32 0.0, %v901
      %v903 = vpop.f32.mrf.mxu0
      %v904 = vadd.f32 0.0, %v903
      %905 = vdwg.mxu0
      %v906 = vld [vmem:[#allocation4] sm:$0xff]
      %v907 = vld [vmem:[#allocation4 + $0x8] sm:$0xff]
      %v908 = vld [vmem:[#allocation4 + $0x10] sm:$0xff]
      %v909 = vld [vmem:[#allocation4 + $0x18] sm:$0xff]
      %v910 = vld [vmem:[#allocation4 + $0x20] sm:$0xff]
      %v911 = vld [vmem:[#allocation4 + $0x28] sm:$0xff]
      %v912 = vld [vmem:[#allocation4 + $0x30] sm:$0xff]
      %v913 = vld [vmem:[#allocation4 + $0x38] sm:$0xff]
      %v914 = vld [vmem:[#allocation4 + $0x40] sm:$0xff]
      %v915 = vld [vmem:[#allocation4 + $0x48] sm:$0xff]
      %v916 = vld [vmem:[#allocation4 + $0x50] sm:$0xff]
      %v917 = vld [vmem:[#allocation4 + $0x58] sm:$0xff]
      %v918 = vld [vmem:[#allocation4 + $0x60] sm:$0xff]
      %v919 = vld [vmem:[#allocation4 + $0x68] sm:$0xff]
      %v920 = vld [vmem:[#allocation4 + $0x70] sm:$0xff]
      %v921 = vld [vmem:[#allocation4 + $0x78] sm:$0xff]
      %922 = vmax.xlane.f32.xlu0 %v867
      %v923 = vpop.xlane.xlu0 %922
      %924 = vmax.xlane.f32.xlu0 %v869
      %v925 = vpop.xlane.xlu0 %924
      %926 = vmax.xlane.f32.xlu0 %v872
      %v927 = vpop.xlane.xlu0 %926
      %928 = vmax.xlane.f32.xlu0 %v874
      %v929 = vpop.xlane.xlu0 %928
      %930 = vmax.xlane.f32.xlu0 %v877
      %v931 = vpop.xlane.xlu0 %930
      %932 = vmax.xlane.f32.xlu0 %v879
      %v933 = vpop.xlane.xlu0 %932
      %934 = vmax.xlane.f32.xlu0 %v882
      %v935 = vpop.xlane.xlu0 %934
      %936 = vmax.xlane.f32.xlu0 %v884
      %v937 = vpop.xlane.xlu0 %936
      %938 = vmax.xlane.f32.xlu0 %v887
      %v939 = vpop.xlane.xlu0 %938
      %940 = vmax.xlane.f32.xlu0 %v889
      %v941 = vpop.xlane.xlu0 %940
      %942 = vmax.xlane.f32.xlu0 %v892
      %v943 = vpop.xlane.xlu0 %942
      %944 = vmax.xlane.f32.xlu0 %v894
      %v945 = vpop.xlane.xlu0 %944
      %946 = vmax.xlane.f32.xlu0 %v897
      %v947 = vpop.xlane.xlu0 %946
      %948 = vmax.xlane.f32.xlu0 %v899
      %v949 = vpop.xlane.xlu0 %948
      %950 = vmax.xlane.f32.xlu0 %v902
      %v951 = vpop.xlane.xlu0 %950
      %952 = vmax.xlane.f32.xlu0 %v904
      %v953 = vpop.xlane.xlu0 %952
      %v954 = vmax.f32 %v906, %v923
      %v955 = vmax.f32 %v907, %v925
      %v956 = vmax.f32 %v908, %v927
      %v957 = vmax.f32 %v909, %v929
      %v958 = vmax.f32 %v910, %v931
      %v959 = vmax.f32 %v911, %v933
      %v960 = vmax.f32 %v912, %v935
      %v961 = vmax.f32 %v913, %v937
      %v962 = vmax.f32 %v914, %v939
      %v963 = vmax.f32 %v915, %v941
      %v964 = vmax.f32 %v916, %v943
      %v965 = vmax.f32 %v917, %v945
      %v966 = vmax.f32 %v918, %v947
      %v967 = vmax.f32 %v919, %v949
      %v968 = vmax.f32 %v920, %v951
      %v969 = vmax.f32 %v921, %v953
      %v970 = vsub.f32 %v906, %v954
      %v971 = vsub.f32 %v907, %v955
      %v972 = vsub.f32 %v908, %v956
      %v973 = vsub.f32 %v909, %v957
      %v974 = vsub.f32 %v910, %v958
      %v975 = vsub.f32 %v911, %v959
      %v976 = vsub.f32 %v912, %v960
      %v977 = vsub.f32 %v913, %v961
      %v978 = vsub.f32 %v914, %v962
      %v979 = vsub.f32 %v915, %v963
      %v980 = vsub.f32 %v916, %v964
      %v981 = vsub.f32 %v917, %v965
      %v982 = vsub.f32 %v918, %v966
      %v983 = vsub.f32 %v919, %v967
      %v984 = vsub.f32 %v920, %v968
      %v985 = vsub.f32 %v921, %v969
      %v986 = vmul.f32 %v970, 1.442695
      %v987 = vpow.pop %v986
      %v988 = vmul.f32 %v971, 1.442695
      %v989 = vpow.pop %v988
      %v990 = vmul.f32 %v972, 1.442695
      %v991 = vpow.pop %v990
      %v992 = vmul.f32 %v973, 1.442695
      %v993 = vpow.pop %v992
      %v994 = vmul.f32 %v974, 1.442695
      %v995 = vpow.pop %v994
      %v996 = vmul.f32 %v975, 1.442695
      %v997 = vpow.pop %v996
      %v998 = vmul.f32 %v976, 1.442695
      %v999 = vpow.pop %v998
      %v1000 = vmul.f32 %v977, 1.442695
      %v1001 = vpow.pop %v1000
      %v1002 = vmul.f32 %v978, 1.442695
      %v1003 = vpow.pop %v1002
      %v1004 = vmul.f32 %v979, 1.442695
      %v1005 = vpow.pop %v1004
      %v1006 = vmul.f32 %v980, 1.442695
      %v1007 = vpow.pop %v1006
      %v1008 = vmul.f32 %v981, 1.442695
      %v1009 = vpow.pop %v1008
      %v1010 = vmul.f32 %v982, 1.442695
      %v1011 = vpow.pop %v1010
      %v1012 = vmul.f32 %v983, 1.442695
      %v1013 = vpow.pop %v1012
      %v1014 = vmul.f32 %v984, 1.442695
      %v1015 = vpow.pop %v1014
      %v1016 = vmul.f32 %v985, 1.442695
      %v1017 = vpow.pop %v1016
      %1019 = vset.pattern.permute.xlu0 0
      %1020 = vperm.xlu0 %1019, %v954
      %v1021 = vpop.permute.xlu0 %1020
      %1024 = vset.pattern.permute.xlu0 0
      %1025 = vperm.xlu0 %1024, %v955
      %v1026 = vpop.permute.xlu0 %1025
      %1029 = vset.pattern.permute.xlu0 0
      %1030 = vperm.xlu0 %1029, %v956
      %v1031 = vpop.permute.xlu0 %1030
      %1034 = vset.pattern.permute.xlu0 0
      %1035 = vperm.xlu0 %1034, %v957
      %v1036 = vpop.permute.xlu0 %1035
      %1039 = vset.pattern.permute.xlu0 0
      %1040 = vperm.xlu0 %1039, %v958
      %v1041 = vpop.permute.xlu0 %1040
      %1044 = vset.pattern.permute.xlu0 0
      %1045 = vperm.xlu0 %1044, %v959
      %v1046 = vpop.permute.xlu0 %1045
      %1049 = vset.pattern.permute.xlu0 0
      %1050 = vperm.xlu0 %1049, %v960
      %v1051 = vpop.permute.xlu0 %1050
      %1054 = vset.pattern.permute.xlu0 0
      %1055 = vperm.xlu0 %1054, %v961
      %v1056 = vpop.permute.xlu0 %1055
      %1059 = vset.pattern.permute.xlu0 0
      %1060 = vperm.xlu0 %1059, %v962
      %v1061 = vpop.permute.xlu0 %1060
      %1064 = vset.pattern.permute.xlu0 0
      %1065 = vperm.xlu0 %1064, %v963
      %v1066 = vpop.permute.xlu0 %1065
      %1069 = vset.pattern.permute.xlu0 0
      %1070 = vperm.xlu0 %1069, %v964
      %v1071 = vpop.permute.xlu0 %1070
      %1074 = vset.pattern.permute.xlu0 0
      %1075 = vperm.xlu0 %1074, %v965
      %v1076 = vpop.permute.xlu0 %1075
      %1079 = vset.pattern.permute.xlu0 0
      %1080 = vperm.xlu0 %1079, %v966
      %v1081 = vpop.permute.xlu0 %1080
      %1084 = vset.pattern.permute.xlu0 0
      %1085 = vperm.xlu0 %1084, %v967
      %v1086 = vpop.permute.xlu0 %1085
      %1089 = vset.pattern.permute.xlu0 0
      %1090 = vperm.xlu0 %1089, %v968
      %v1091 = vpop.permute.xlu0 %1090
      %1094 = vset.pattern.permute.xlu0 0
      %1095 = vperm.xlu0 %1094, %v969
      %v1096 = vpop.permute.xlu0 %1095
      %v1098 = vsub.f32 %v867, %v1021
      %v1099 = vsub.f32 %v869, %v1026
      %v1100 = vsub.f32 %v872, %v1031
      %v1101 = vsub.f32 %v874, %v1036
      %v1102 = vsub.f32 %v877, %v1041
      %v1103 = vsub.f32 %v879, %v1046
      %v1104 = vsub.f32 %v882, %v1051
      %v1105 = vsub.f32 %v884, %v1056
      %v1106 = vsub.f32 %v887, %v1061
      %v1107 = vsub.f32 %v889, %v1066
      %v1108 = vsub.f32 %v892, %v1071
      %v1109 = vsub.f32 %v894, %v1076
      %v1110 = vsub.f32 %v897, %v1081
      %v1111 = vsub.f32 %v899, %v1086
      %v1112 = vsub.f32 %v902, %v1091
      %v1113 = vsub.f32 %v904, %v1096
      %v1114 = vmul.f32 %v1098, 1.442695
      %v1115 = vpow.pop %v1114
      %v1116 = vmul.f32 %v1099, 1.442695
      %v1117 = vpow.pop %v1116
      %v1118 = vmul.f32 %v1100, 1.442695
      %v1119 = vpow.pop %v1118
      %v1120 = vmul.f32 %v1101, 1.442695
      %v1121 = vpow.pop %v1120
      %v1122 = vmul.f32 %v1102, 1.442695
      %v1123 = vpow.pop %v1122
      %v1124 = vmul.f32 %v1103, 1.442695
      %v1125 = vpow.pop %v1124
      %v1126 = vmul.f32 %v1104, 1.442695
      %v1127 = vpow.pop %v1126
      %v1128 = vmul.f32 %v1105, 1.442695
      %v1129 = vpow.pop %v1128
      %v1130 = vmul.f32 %v1106, 1.442695
      %v1131 = vpow.pop %v1130
      %v1132 = vmul.f32 %v1107, 1.442695
      %v1133 = vpow.pop %v1132
      %v1134 = vmul.f32 %v1108, 1.442695
      %v1135 = vpow.pop %v1134
      %v1136 = vmul.f32 %v1109, 1.442695
      %v1137 = vpow.pop %v1136
      %v1138 = vmul.f32 %v1110, 1.442695
      %v1139 = vpow.pop %v1138
      %v1140 = vmul.f32 %v1111, 1.442695
      %v1141 = vpow.pop %v1140
      %v1142 = vmul.f32 %v1112, 1.442695
      %v1143 = vpow.pop %v1142
      %v1144 = vmul.f32 %v1113, 1.442695
      %v1145 = vpow.pop %v1144
      %v1146 = vld [vmem:[#allocation5] sm:$0xff]
      %v1147 = vld [vmem:[#allocation5 + $0x8] sm:$0xff]
      %v1148 = vld [vmem:[#allocation5 + $0x10] sm:$0xff]
      %v1149 = vld [vmem:[#allocation5 + $0x18] sm:$0xff]
      %v1150 = vld [vmem:[#allocation5 + $0x20] sm:$0xff]
      %v1151 = vld [vmem:[#allocation5 + $0x28] sm:$0xff]
      %v1152 = vld [vmem:[#allocation5 + $0x30] sm:$0xff]
      %v1153 = vld [vmem:[#allocation5 + $0x38] sm:$0xff]
      %v1154 = vld [vmem:[#allocation5 + $0x40] sm:$0xff]
      %v1155 = vld [vmem:[#allocation5 + $0x48] sm:$0xff]
      %v1156 = vld [vmem:[#allocation5 + $0x50] sm:$0xff]
      %v1157 = vld [vmem:[#allocation5 + $0x58] sm:$0xff]
      %v1158 = vld [vmem:[#allocation5 + $0x60] sm:$0xff]
      %v1159 = vld [vmem:[#allocation5 + $0x68] sm:$0xff]
      %v1160 = vld [vmem:[#allocation5 + $0x70] sm:$0xff]
      %v1161 = vld [vmem:[#allocation5 + $0x78] sm:$0xff]
      %v1162 = vmul.f32 %v987, %v1146
      %v1163 = vmul.f32 %v989, %v1147
      %v1164 = vmul.f32 %v991, %v1148
      %v1165 = vmul.f32 %v993, %v1149
      %v1166 = vmul.f32 %v995, %v1150
      %v1167 = vmul.f32 %v997, %v1151
      %v1168 = vmul.f32 %v999, %v1152
      %v1169 = vmul.f32 %v1001, %v1153
      %v1170 = vmul.f32 %v1003, %v1154
      %v1171 = vmul.f32 %v1005, %v1155
      %v1172 = vmul.f32 %v1007, %v1156
      %v1173 = vmul.f32 %v1009, %v1157
      %v1174 = vmul.f32 %v1011, %v1158
      %v1175 = vmul.f32 %v1013, %v1159
      %v1176 = vmul.f32 %v1015, %v1160
      %v1177 = vmul.f32 %v1017, %v1161
      %1178 = vadd.xlane.f32.xlu0 %v1115
      %v1179 = vpop.xlane.xlu0 %1178
      %1180 = vadd.xlane.f32.xlu0 %v1117
      %v1181 = vpop.xlane.xlu0 %1180
      %1182 = vadd.xlane.f32.xlu0 %v1119
      %v1183 = vpop.xlane.xlu0 %1182
      %1184 = vadd.xlane.f32.xlu0 %v1121
      %v1185 = vpop.xlane.xlu0 %1184
      %1186 = vadd.xlane.f32.xlu0 %v1123
      %v1187 = vpop.xlane.xlu0 %1186
      %1188 = vadd.xlane.f32.xlu0 %v1125
      %v1189 = vpop.xlane.xlu0 %1188
      %1190 = vadd.xlane.f32.xlu0 %v1127
      %v1191 = vpop.xlane.xlu0 %1190
      %1192 = vadd.xlane.f32.xlu0 %v1129
      %v1193 = vpop.xlane.xlu0 %1192
      %1194 = vadd.xlane.f32.xlu0 %v1131
      %v1195 = vpop.xlane.xlu0 %1194
      %1196 = vadd.xlane.f32.xlu0 %v1133
      %v1197 = vpop.xlane.xlu0 %1196
      %1198 = vadd.xlane.f32.xlu0 %v1135
      %v1199 = vpop.xlane.xlu0 %1198
      %1200 = vadd.xlane.f32.xlu0 %v1137
      %v1201 = vpop.xlane.xlu0 %1200
      %1202 = vadd.xlane.f32.xlu0 %v1139
      %v1203 = vpop.xlane.xlu0 %1202
      %1204 = vadd.xlane.f32.xlu0 %v1141
      %v1205 = vpop.xlane.xlu0 %1204
      %1206 = vadd.xlane.f32.xlu0 %v1143
      %v1207 = vpop.xlane.xlu0 %1206
      %1208 = vadd.xlane.f32.xlu0 %v1145
      %v1209 = vpop.xlane.xlu0 %1208
      %v1210 = vadd.f32 %v1162, %v1179
      %v1211 = vadd.f32 %v1163, %v1181
      %v1212 = vadd.f32 %v1164, %v1183
      %v1213 = vadd.f32 %v1165, %v1185
      %v1214 = vadd.f32 %v1166, %v1187
      %v1215 = vadd.f32 %v1167, %v1189
      %v1216 = vadd.f32 %v1168, %v1191
      %v1217 = vadd.f32 %v1169, %v1193
      %v1218 = vadd.f32 %v1170, %v1195
      %v1219 = vadd.f32 %v1171, %v1197
      %v1220 = vadd.f32 %v1172, %v1199
      %v1221 = vadd.f32 %v1173, %v1201
      %v1222 = vadd.f32 %v1174, %v1203
      %v1223 = vadd.f32 %v1175, %v1205
      %v1224 = vadd.f32 %v1176, %v1207
      %v1225 = vadd.f32 %v1177, %v1209
      %vm1226 = vcmask 7168
      %1227 = vst.msk [vmem:[#allocation5] sm:$0xff] %vm1226, %v1210
      %1228 = vst.msk [vmem:[#allocation5 + $0x8] sm:$0xff] %vm1226, %v1211
      %1229 = vst.msk [vmem:[#allocation5 + $0x10] sm:$0xff] %vm1226, %v1212
      %1230 = vst.msk [vmem:[#allocation5 + $0x18] sm:$0xff] %vm1226, %v1213
      %1231 = vst.msk [vmem:[#allocation5 + $0x20] sm:$0xff] %vm1226, %v1214
      %1232 = vst.msk [vmem:[#allocation5 + $0x28] sm:$0xff] %vm1226, %v1215
      %1233 = vst.msk [vmem:[#allocation5 + $0x30] sm:$0xff] %vm1226, %v1216
      %1234 = vst.msk [vmem:[#allocation5 + $0x38] sm:$0xff] %vm1226, %v1217
      %1235 = vst.msk [vmem:[#allocation5 + $0x40] sm:$0xff] %vm1226, %v1218
      %1236 = vst.msk [vmem:[#allocation5 + $0x48] sm:$0xff] %vm1226, %v1219
      %1237 = vst.msk [vmem:[#allocation5 + $0x50] sm:$0xff] %vm1226, %v1220
      %1238 = vst.msk [vmem:[#allocation5 + $0x58] sm:$0xff] %vm1226, %v1221
      %1239 = vst.msk [vmem:[#allocation5 + $0x60] sm:$0xff] %vm1226, %v1222
      %1240 = vst.msk [vmem:[#allocation5 + $0x68] sm:$0xff] %vm1226, %v1223
      %1241 = vst.msk [vmem:[#allocation5 + $0x70] sm:$0xff] %vm1226, %v1224
      %1242 = vst.msk [vmem:[#allocation5 + $0x78] sm:$0xff] %vm1226, %v1225
      %v1243 = vld [vmem:[#allocation3] sm:$0xff]
      %v1244 = vld [vmem:[#allocation3 + $0x8] sm:$0xff]
      %v1245 = vld [vmem:[#allocation3 + $0x10] sm:$0xff]
      %v1246 = vld [vmem:[#allocation3 + $0x18] sm:$0xff]
      %v1247 = vld [vmem:[#allocation3 + $0x20] sm:$0xff]
      %v1248 = vld [vmem:[#allocation3 + $0x28] sm:$0xff]
      %v1249 = vld [vmem:[#allocation3 + $0x30] sm:$0xff]
      %v1250 = vld [vmem:[#allocation3 + $0x38] sm:$0xff]
      %v1251 = vld [vmem:[#allocation3 + $0x40] sm:$0xff]
      %v1252 = vld [vmem:[#allocation3 + $0x48] sm:$0xff]
      %v1253 = vld [vmem:[#allocation3 + $0x50] sm:$0xff]
      %v1254 = vld [vmem:[#allocation3 + $0x58] sm:$0xff]
      %v1255 = vld [vmem:[#allocation3 + $0x60] sm:$0xff]
      %v1256 = vld [vmem:[#allocation3 + $0x68] sm:$0xff]
      %v1257 = vld [vmem:[#allocation3 + $0x70] sm:$0xff]
      %v1258 = vld [vmem:[#allocation3 + $0x78] sm:$0xff]
      %1260 = vset.pattern.permute.xlu0 0
      %1261 = vperm.xlu0 %1260, %v987
      %v1262 = vpop.permute.xlu0 %1261
      %1265 = vset.pattern.permute.xlu0 0
      %1266 = vperm.xlu0 %1265, %v989
      %v1267 = vpop.permute.xlu0 %1266
      %1270 = vset.pattern.permute.xlu0 0
      %1271 = vperm.xlu0 %1270, %v991
      %v1272 = vpop.permute.xlu0 %1271
      %1275 = vset.pattern.permute.xlu0 0
      %1276 = vperm.xlu0 %1275, %v993
      %v1277 = vpop.permute.xlu0 %1276
      %1280 = vset.pattern.permute.xlu0 0
      %1281 = vperm.xlu0 %1280, %v995
      %v1282 = vpop.permute.xlu0 %1281
      %1285 = vset.pattern.permute.xlu0 0
      %1286 = vperm.xlu0 %1285, %v997
      %v1287 = vpop.permute.xlu0 %1286
      %1290 = vset.pattern.permute.xlu0 0
      %1291 = vperm.xlu0 %1290, %v999
      %v1292 = vpop.permute.xlu0 %1291
      %1295 = vset.pattern.permute.xlu0 0
      %1296 = vperm.xlu0 %1295, %v1001
      %v1297 = vpop.permute.xlu0 %1296
      %1300 = vset.pattern.permute.xlu0 0
      %1301 = vperm.xlu0 %1300, %v1003
      %v1302 = vpop.permute.xlu0 %1301
      %1305 = vset.pattern.permute.xlu0 0
      %1306 = vperm.xlu0 %1305, %v1005
      %v1307 = vpop.permute.xlu0 %1306
      %1310 = vset.pattern.permute.xlu0 0
      %1311 = vperm.xlu0 %1310, %v1007
      %v1312 = vpop.permute.xlu0 %1311
      %1315 = vset.pattern.permute.xlu0 0
      %1316 = vperm.xlu0 %1315, %v1009
      %v1317 = vpop.permute.xlu0 %1316
      %1320 = vset.pattern.permute.xlu0 0
      %1321 = vperm.xlu0 %1320, %v1011
      %v1322 = vpop.permute.xlu0 %1321
      %1325 = vset.pattern.permute.xlu0 0
      %1326 = vperm.xlu0 %1325, %v1013
      %v1327 = vpop.permute.xlu0 %1326
      %1330 = vset.pattern.permute.xlu0 0
      %1331 = vperm.xlu0 %1330, %v1015
      %v1332 = vpop.permute.xlu0 %1331
      %1335 = vset.pattern.permute.xlu0 0
      %1336 = vperm.xlu0 %1335, %v1017
      %v1337 = vpop.permute.xlu0 %1336
      %v1339 = vmul.f32 %v1262, %v1243
      %v1340 = vmul.f32 %v1267, %v1244
      %v1341 = vmul.f32 %v1272, %v1245
      %v1342 = vmul.f32 %v1277, %v1246
      %v1343 = vmul.f32 %v1282, %v1247
      %v1344 = vmul.f32 %v1287, %v1248
      %v1345 = vmul.f32 %v1292, %v1249
      %v1346 = vmul.f32 %v1297, %v1250
      %v1347 = vmul.f32 %v1302, %v1251
      %v1348 = vmul.f32 %v1307, %v1252
      %v1349 = vmul.f32 %v1312, %v1253
      %v1350 = vmul.f32 %v1317, %v1254
      %v1351 = vmul.f32 %v1322, %v1255
      %v1352 = vmul.f32 %v1327, %v1256
      %v1353 = vmul.f32 %v1332, %v1257
      %v1354 = vmul.f32 %v1337, %v1258
      %v1355 = vpack.c.bf16 %v1117, %v1115
      %v1356 = vpack.c.bf16 %v1121, %v1119
      %v1357 = vpack.c.bf16 %v1125, %v1123
      %v1358 = vpack.c.bf16 %v1129, %v1127
      %v1359 = vpack.c.bf16 %v1133, %v1131
      %v1360 = vpack.c.bf16 %v1137, %v1135
      %v1361 = vpack.c.bf16 %v1141, %v1139
      %v1362 = vpack.c.bf16 %v1145, %v1143
      %1363 = vmatpush.bf16.msra.mxu0 %v727
      %1364 = vmatpush.bf16.msra.mxu0 %v726
      %1365 = vmatpush.bf16.msra.mxu0 %v725
      %1366 = vmatpush.bf16.msra.mxu0 %v724
      %1367 = vmatpush.bf16.msra.mxu0 %v723
      %1368 = vmatpush.bf16.msra.mxu0 %v722
      %1369 = vmatpush.bf16.msra.mxu0 %v721
      %1370 = vmatpush.bf16.msra.mxu0 %v720
      %1371 = vmatmul.bf16.gmra.mxu0 %v1355
      %v1372 = vpop.f32.mrf.mxu0
      %v1373 = vadd.f32 0.0, %v1372
      %v1374 = vpop.f32.mrf.mxu0
      %v1375 = vadd.f32 0.0, %v1374
      %1376 = vmatmul.bf16.gmra.mxu0 %v1356
      %v1377 = vpop.f32.mrf.mxu0
      %v1378 = vadd.f32 0.0, %v1377
      %v1379 = vpop.f32.mrf.mxu0
      %v1380 = vadd.f32 0.0, %v1379
      %1381 = vmatmul.bf16.gmra.mxu0 %v1357
      %v1382 = vpop.f32.mrf.mxu0
      %v1383 = vadd.f32 0.0, %v1382
      %v1384 = vpop.f32.mrf.mxu0
      %v1385 = vadd.f32 0.0, %v1384
      %1386 = vmatmul.bf16.gmra.mxu0 %v1358
      %v1387 = vpop.f32.mrf.mxu0
      %v1388 = vadd.f32 0.0, %v1387
      %v1389 = vpop.f32.mrf.mxu0
      %v1390 = vadd.f32 0.0, %v1389
      %1391 = vmatmul.bf16.gmra.mxu0 %v1359
      %v1392 = vpop.f32.mrf.mxu0
      %v1393 = vadd.f32 0.0, %v1392
      %v1394 = vpop.f32.mrf.mxu0
      %v1395 = vadd.f32 0.0, %v1394
      %1396 = vmatmul.bf16.gmra.mxu0 %v1360
      %v1397 = vpop.f32.mrf.mxu0
      %v1398 = vadd.f32 0.0, %v1397
      %v1399 = vpop.f32.mrf.mxu0
      %v1400 = vadd.f32 0.0, %v1399
      %1401 = vmatmul.bf16.gmra.mxu0 %v1361
      %v1402 = vpop.f32.mrf.mxu0
      %v1403 = vadd.f32 0.0, %v1402
      %v1404 = vpop.f32.mrf.mxu0
      %v1405 = vadd.f32 0.0, %v1404
      %1406 = vmatmul.bf16.gmra.mxu0 %v1362
      %v1407 = vpop.f32.mrf.mxu0
      %v1408 = vadd.f32 0.0, %v1407
      %v1409 = vpop.f32.mrf.mxu0
      %v1410 = vadd.f32 0.0, %v1409
      %1411 = vdwg.mxu0
      %v1412 = vadd.f32 %v1339, %v1373
      %v1413 = vadd.f32 %v1340, %v1375
      %v1414 = vadd.f32 %v1341, %v1378
      %v1415 = vadd.f32 %v1342, %v1380
      %v1416 = vadd.f32 %v1343, %v1383
      %v1417 = vadd.f32 %v1344, %v1385
      %v1418 = vadd.f32 %v1345, %v1388
      %v1419 = vadd.f32 %v1346, %v1390
      %v1420 = vadd.f32 %v1347, %v1393
      %v1421 = vadd.f32 %v1348, %v1395
      %v1422 = vadd.f32 %v1349, %v1398
      %v1423 = vadd.f32 %v1350, %v1400
      %v1424 = vadd.f32 %v1351, %v1403
      %v1425 = vadd.f32 %v1352, %v1405
      %v1426 = vadd.f32 %v1353, %v1408
      %v1427 = vadd.f32 %v1354, %v1410
      %1428 = vst.msk [vmem:[#allocation3] sm:$0xff] %vm606, %v1412
      %1429 = vst.msk [vmem:[#allocation3 + $0x8] sm:$0xff] %vm606, %v1413
      %1430 = vst.msk [vmem:[#allocation3 + $0x10] sm:$0xff] %vm606, %v1414
      %1431 = vst.msk [vmem:[#allocation3 + $0x18] sm:$0xff] %vm606, %v1415
      %1432 = vst.msk [vmem:[#allocation3 + $0x20] sm:$0xff] %vm606, %v1416
      %1433 = vst.msk [vmem:[#allocation3 + $0x28] sm:$0xff] %vm606, %v1417
      %1434 = vst.msk [vmem:[#allocation3 + $0x30] sm:$0xff] %vm606, %v1418
      %1435 = vst.msk [vmem:[#allocation3 + $0x38] sm:$0xff] %vm606, %v1419
      %1436 = vst.msk [vmem:[#allocation3 + $0x40] sm:$0xff] %vm606, %v1420
      %1437 = vst.msk [vmem:[#allocation3 + $0x48] sm:$0xff] %vm606, %v1421
      %1438 = vst.msk [vmem:[#allocation3 + $0x50] sm:$0xff] %vm606, %v1422
      %1439 = vst.msk [vmem:[#allocation3 + $0x58] sm:$0xff] %vm606, %v1423
      %1440 = vst.msk [vmem:[#allocation3 + $0x60] sm:$0xff] %vm606, %v1424
      %1441 = vst.msk [vmem:[#allocation3 + $0x68] sm:$0xff] %vm606, %v1425
      %1442 = vst.msk [vmem:[#allocation3 + $0x70] sm:$0xff] %vm606, %v1426
      %1443 = vst.msk [vmem:[#allocation3 + $0x78] sm:$0xff] %vm606, %v1427
      %1444 = vst.msk [vmem:[#allocation4] sm:$0xff] %vm1226, %v954
      %1445 = vst.msk [vmem:[#allocation4 + $0x8] sm:$0xff] %vm1226, %v955
      %1446 = vst.msk [vmem:[#allocation4 + $0x10] sm:$0xff] %vm1226, %v956
      %1447 = vst.msk [vmem:[#allocation4 + $0x18] sm:$0xff] %vm1226, %v957
      %1448 = vst.msk [vmem:[#allocation4 + $0x20] sm:$0xff] %vm1226, %v958
      %1449 = vst.msk [vmem:[#allocation4 + $0x28] sm:$0xff] %vm1226, %v959
      %1450 = vst.msk [vmem:[#allocation4 + $0x30] sm:$0xff] %vm1226, %v960
      %1451 = vst.msk [vmem:[#allocation4 + $0x38] sm:$0xff] %vm1226, %v961
      %1452 = vst.msk [vmem:[#allocation4 + $0x40] sm:$0xff] %vm1226, %v962
      %1453 = vst.msk [vmem:[#allocation4 + $0x48] sm:$0xff] %vm1226, %v963
      %1454 = vst.msk [vmem:[#allocation4 + $0x50] sm:$0xff] %vm1226, %v964
      %1455 = vst.msk [vmem:[#allocation4 + $0x58] sm:$0xff] %vm1226, %v965
      %1456 = vst.msk [vmem:[#allocation4 + $0x60] sm:$0xff] %vm1226, %v966
      %1457 = vst.msk [vmem:[#allocation4 + $0x68] sm:$0xff] %vm1226, %v967
      %1458 = vst.msk [vmem:[#allocation4 + $0x70] sm:$0xff] %vm1226, %v968
      %1459 = vst.msk [vmem:[#allocation4 + $0x78] sm:$0xff] %vm1226, %v969
      %p1460 = scmp.eq.s32.totalorder %s26, 1
      // Predicated region
      $region53: #{tpu_custom_call.1} parent=47 // pred_check
        %p1461 = pneg %p1460
      $region54: #{tpu_custom_call.1} parent=47 // pred_check_branch
        %1463 = sbr.rel (%p1461) target = $region56
      $region55: #{tpu_custom_call.1} parent=47 // pred_region
        %s1464 = sld [smem:[#allocation6]]
        %v1465 = vld [vmem:[#allocation5] sm:$0xff]
        %v1466 = vld [vmem:[#allocation5 + $0x8] sm:$0xff]
        %v1467 = vld [vmem:[#allocation5 + $0x10] sm:$0xff]
        %v1468 = vld [vmem:[#allocation5 + $0x18] sm:$0xff]
        %v1469 = vld [vmem:[#allocation5 + $0x20] sm:$0xff]
        %v1470 = vld [vmem:[#allocation5 + $0x28] sm:$0xff]
        %v1471 = vld [vmem:[#allocation5 + $0x30] sm:$0xff]
        %v1472 = vld [vmem:[#allocation5 + $0x38] sm:$0xff]
        %v1473 = vld [vmem:[#allocation5 + $0x40] sm:$0xff]
        %v1474 = vld [vmem:[#allocation5 + $0x48] sm:$0xff]
        %v1475 = vld [vmem:[#allocation5 + $0x50] sm:$0xff]
        %v1476 = vld [vmem:[#allocation5 + $0x58] sm:$0xff]
        %v1477 = vld [vmem:[#allocation5 + $0x60] sm:$0xff]
        %v1478 = vld [vmem:[#allocation5 + $0x68] sm:$0xff]
        %v1479 = vld [vmem:[#allocation5 + $0x70] sm:$0xff]
        %v1480 = vld [vmem:[#allocation5 + $0x78] sm:$0xff]
        %v1481 = vrcp.pop %v1465
        %v1482 = vrcp.pop %v1466
        %v1483 = vrcp.pop %v1467
        %v1484 = vrcp.pop %v1468
        %v1485 = vrcp.pop %v1469
        %v1486 = vrcp.pop %v1470
        %v1487 = vrcp.pop %v1471
        %v1488 = vrcp.pop %v1472
        %v1489 = vrcp.pop %v1473
        %v1490 = vrcp.pop %v1474
        %v1491 = vrcp.pop %v1475
        %v1492 = vrcp.pop %v1476
        %v1493 = vrcp.pop %v1477
        %v1494 = vrcp.pop %v1478
        %v1495 = vrcp.pop %v1479
        %v1496 = vrcp.pop %v1480
        %v1497 = vld [vmem:[#allocation3] sm:$0xff]
        %v1498 = vld [vmem:[#allocation3 + $0x8] sm:$0xff]
        %v1499 = vld [vmem:[#allocation3 + $0x10] sm:$0xff]
        %v1500 = vld [vmem:[#allocation3 + $0x18] sm:$0xff]
        %v1501 = vld [vmem:[#allocation3 + $0x20] sm:$0xff]
        %v1502 = vld [vmem:[#allocation3 + $0x28] sm:$0xff]
        %v1503 = vld [vmem:[#allocation3 + $0x30] sm:$0xff]
        %v1504 = vld [vmem:[#allocation3 + $0x38] sm:$0xff]
        %v1505 = vld [vmem:[#allocation3 + $0x40] sm:$0xff]
        %v1506 = vld [vmem:[#allocation3 + $0x48] sm:$0xff]
        %v1507 = vld [vmem:[#allocation3 + $0x50] sm:$0xff]
        %v1508 = vld [vmem:[#allocation3 + $0x58] sm:$0xff]
        %v1509 = vld [vmem:[#allocation3 + $0x60] sm:$0xff]
        %v1510 = vld [vmem:[#allocation3 + $0x68] sm:$0xff]
        %v1511 = vld [vmem:[#allocation3 + $0x70] sm:$0xff]
        %v1512 = vld [vmem:[#allocation3 + $0x78] sm:$0xff]
        %1514 = vset.pattern.permute.xlu0 0
        %1515 = vperm.xlu0 %1514, %v1481
        %v1516 = vpop.permute.xlu0 %1515
        %1519 = vset.pattern.permute.xlu0 0
        %1520 = vperm.xlu0 %1519, %v1482
        %v1521 = vpop.permute.xlu0 %1520
        %1524 = vset.pattern.permute.xlu0 0
        %1525 = vperm.xlu0 %1524, %v1483
        %v1526 = vpop.permute.xlu0 %1525
        %1529 = vset.pattern.permute.xlu0 0
        %1530 = vperm.xlu0 %1529, %v1484
        %v1531 = vpop.permute.xlu0 %1530
        %1534 = vset.pattern.permute.xlu0 0
        %1535 = vperm.xlu0 %1534, %v1485
        %v1536 = vpop.permute.xlu0 %1535
        %1539 = vset.pattern.permute.xlu0 0
        %1540 = vperm.xlu0 %1539, %v1486
        %v1541 = vpop.permute.xlu0 %1540
        %1544 = vset.pattern.permute.xlu0 0
        %1545 = vperm.xlu0 %1544, %v1487
        %v1546 = vpop.permute.xlu0 %1545
        %1549 = vset.pattern.permute.xlu0 0
        %1550 = vperm.xlu0 %1549, %v1488
        %v1551 = vpop.permute.xlu0 %1550
        %1554 = vset.pattern.permute.xlu0 0
        %1555 = vperm.xlu0 %1554, %v1489
        %v1556 = vpop.permute.xlu0 %1555
        %1559 = vset.pattern.permute.xlu0 0
        %1560 = vperm.xlu0 %1559, %v1490
        %v1561 = vpop.permute.xlu0 %1560
        %1564 = vset.pattern.permute.xlu0 0
        %1565 = vperm.xlu0 %1564, %v1491
        %v1566 = vpop.permute.xlu0 %1565
        %1569 = vset.pattern.permute.xlu0 0
        %1570 = vperm.xlu0 %1569, %v1492
        %v1571 = vpop.permute.xlu0 %1570
        %1574 = vset.pattern.permute.xlu0 0
        %1575 = vperm.xlu0 %1574, %v1493
        %v1576 = vpop.permute.xlu0 %1575
        %1579 = vset.pattern.permute.xlu0 0
        %1580 = vperm.xlu0 %1579, %v1494
        %v1581 = vpop.permute.xlu0 %1580
        %1584 = vset.pattern.permute.xlu0 0
        %1585 = vperm.xlu0 %1584, %v1495
        %v1586 = vpop.permute.xlu0 %1585
        %1589 = vset.pattern.permute.xlu0 0
        %1590 = vperm.xlu0 %1589, %v1496
        %v1591 = vpop.permute.xlu0 %1590
        %v1593 = vmul.f32 %v1497, %v1516
        %v1594 = vmul.f32 %v1498, %v1521
        %v1595 = vmul.f32 %v1499, %v1526
        %v1596 = vmul.f32 %v1500, %v1531
        %v1597 = vmul.f32 %v1501, %v1536
        %v1598 = vmul.f32 %v1502, %v1541
        %v1599 = vmul.f32 %v1503, %v1546
        %v1600 = vmul.f32 %v1504, %v1551
        %v1601 = vmul.f32 %v1505, %v1556
        %v1602 = vmul.f32 %v1506, %v1561
        %v1603 = vmul.f32 %v1507, %v1566
        %v1604 = vmul.f32 %v1508, %v1571
        %v1605 = vmul.f32 %v1509, %v1576
        %v1606 = vmul.f32 %v1510, %v1581
        %v1607 = vmul.f32 %v1511, %v1586
        %v1608 = vmul.f32 %v1512, %v1591
        %v1609 = vstv %s1464
        %v1610 = vmul.f32 %v1609, %v1593
        %v1611 = vmul.f32 %v1609, %v1594
        %v1612 = vmul.f32 %v1609, %v1595
        %v1613 = vmul.f32 %v1609, %v1596
        %v1614 = vmul.f32 %v1609, %v1597
        %v1615 = vmul.f32 %v1609, %v1598
        %v1616 = vmul.f32 %v1609, %v1599
        %v1617 = vmul.f32 %v1609, %v1600
        %v1618 = vmul.f32 %v1609, %v1601
        %v1619 = vmul.f32 %v1609, %v1602
        %v1620 = vmul.f32 %v1609, %v1603
        %v1621 = vmul.f32 %v1609, %v1604
        %v1622 = vmul.f32 %v1609, %v1605
        %v1623 = vmul.f32 %v1609, %v1606
        %v1624 = vmul.f32 %v1609, %v1607
        %v1625 = vmul.f32 %v1609, %v1608
        %v1626 = vld [vmem:[%s340] sm:$0xff]
        %v1627 = vld [vmem:[%s340 + $0x8] sm:$0xff]
        %v1628 = vld [vmem:[%s340 + $0x10] sm:$0xff]
        %v1629 = vld [vmem:[%s340 + $0x18] sm:$0xff]
        %v1630 = vld [vmem:[%s340 + $0x20] sm:$0xff]
        %v1631 = vld [vmem:[%s340 + $0x28] sm:$0xff]
        %v1632 = vld [vmem:[%s340 + $0x30] sm:$0xff]
        %v1633 = vld [vmem:[%s340 + $0x38] sm:$0xff]
        %v1634 = vld [vmem:[%s340 + $0x40] sm:$0xff]
        %v1635 = vld [vmem:[%s340 + $0x48] sm:$0xff]
        %v1636 = vld [vmem:[%s340 + $0x50] sm:$0xff]
        %v1637 = vld [vmem:[%s340 + $0x58] sm:$0xff]
        %v1638 = vld [vmem:[%s340 + $0x60] sm:$0xff]
        %v1639 = vld [vmem:[%s340 + $0x68] sm:$0xff]
        %v1640 = vld [vmem:[%s340 + $0x70] sm:$0xff]
        %v1641 = vld [vmem:[%s340 + $0x78] sm:$0xff]
        %v1642 = vadd.f32 %v1610, %v1626
        %v1643 = vadd.f32 %v1611, %v1627
        %v1644 = vadd.f32 %v1612, %v1628
        %v1645 = vadd.f32 %v1613, %v1629
        %v1646 = vadd.f32 %v1614, %v1630
        %v1647 = vadd.f32 %v1615, %v1631
        %v1648 = vadd.f32 %v1616, %v1632
        %v1649 = vadd.f32 %v1617, %v1633
        %v1650 = vadd.f32 %v1618, %v1634
        %v1651 = vadd.f32 %v1619, %v1635
        %v1652 = vadd.f32 %v1620, %v1636
        %v1653 = vadd.f32 %v1621, %v1637
        %v1654 = vadd.f32 %v1622, %v1638
        %v1655 = vadd.f32 %v1623, %v1639
        %v1656 = vadd.f32 %v1624, %v1640
        %v1657 = vadd.f32 %v1625, %v1641
        %1658 = vst.msk [vmem:[%s360] sm:$0xff] %vm606, %v1642
        %1659 = vst.msk [vmem:[%s360 + $0x8] sm:$0xff] %vm606, %v1643
        %1660 = vst.msk [vmem:[%s360 + $0x10] sm:$0xff] %vm606, %v1644
        %1661 = vst.msk [vmem:[%s360 + $0x18] sm:$0xff] %vm606, %v1645
        %1662 = vst.msk [vmem:[%s360 + $0x20] sm:$0xff] %vm606, %v1646
        %1663 = vst.msk [vmem:[%s360 + $0x28] sm:$0xff] %vm606, %v1647
        %1664 = vst.msk [vmem:[%s360 + $0x30] sm:$0xff] %vm606, %v1648
        %1665 = vst.msk [vmem:[%s360 + $0x38] sm:$0xff] %vm606, %v1649
        %1666 = vst.msk [vmem:[%s360 + $0x40] sm:$0xff] %vm606, %v1650
        %1667 = vst.msk [vmem:[%s360 + $0x48] sm:$0xff] %vm606, %v1651
        %1668 = vst.msk [vmem:[%s360 + $0x50] sm:$0xff] %vm606, %v1652
        %1669 = vst.msk [vmem:[%s360 + $0x58] sm:$0xff] %vm606, %v1653
        %1670 = vst.msk [vmem:[%s360 + $0x60] sm:$0xff] %vm606, %v1654
        %1671 = vst.msk [vmem:[%s360 + $0x68] sm:$0xff] %vm606, %v1655
        %1672 = vst.msk [vmem:[%s360 + $0x70] sm:$0xff] %vm606, %v1656
        %1673 = vst.msk [vmem:[%s360 + $0x78] sm:$0xff] %vm606, %v1657
      $region56: #{tpu_custom_call.1} parent=47 // pred_fallthru
        _
      %s1674 = smul.u32 16, %s25
      %p1675 = scmp.lt.s32.totalorder %s24, 1
      %s1676 = scalar_select %p1675, %s24, 1
      %p1677 = scmp.lt.s32.totalorder %s1674, 31
      %s1678 = scalar_select %p1677, %s1674, 31
      %s1679 = smul.addr %s1676, 32
      %s1680 = sadd.s32 %s1678, %s1679
      %s1681 = smul.addr %s1680, 8
      %s1682 = scalar_lea.vmem %s7, %s1681
      // Predicated region
      $region57: #{tpu_custom_call.1} parent=47 // pred_check
        %p1683 = pneg %p219
      $region58: #{tpu_custom_call.1} parent=47 // pred_check_branch
        %1685 = sbr.rel (%p1683) target = $region60
      $region59: #{tpu_custom_call.1} parent=47 // pred_region
        %s1686 = smul.u32 16, %s25
      $region60: #{tpu_custom_call.1} parent=47 // pred_fallthru
        _
    $region48: #{tpu_custom_call.1} parent=5 // pred_fallthru
      _
    %p1687 = scmp.le.s32.totalorder 2, %s14
    // Predicated region
    $region61: #{tpu_custom_call.1} parent=5 // pred_check
      %p1688 = pneg %p1687
    $region62: #{tpu_custom_call.1} parent=5 // pred_check_branch
      %1690 = sbr.rel (%p1688) target = $region64
    $region63: #{tpu_custom_call.1} parent=5 // pred_region
      %s1691 = ssub.s32 %s14, 2
      // Predicated region
      $region65: #{tpu_custom_call.1} parent=63 // pred_check
        %p1692 = pneg %p225
      $region66: #{tpu_custom_call.1} parent=63 // pred_check_branch
        %1694 = sbr.rel (%p1692) target = $region68
      $region67: #{tpu_custom_call.1} parent=63 // pred_region
        %s1695 = smul.u32 16, %s28
        %p1696 = scmp.lt.s32.totalorder %s27, 1
        %s1697 = scalar_select %p1696, %s27, 1
        %p1698 = scmp.lt.s32.totalorder %s1695, 31
        %s1699 = scalar_select %p1698, %s1695, 31
        %s1700 = smul.addr %s1697, 32
        %s1701 = sadd.s32 %s1699, %s1700
        %s1702 = smul.addr %s1701, 8
        %s1703 = scalar_lea.vmem %s7, %s1702
      $region68: #{tpu_custom_call.1} parent=63 // pred_fallthru
        _
    $region64: #{tpu_custom_call.1} parent=5 // pred_fallthru
      _
  $region6: #{tpu_custom_call.1} parent=0 // loop_footer
    %s18 = sadd.s32 1, %s14
  $region7: #{tpu_custom_call.1} parent=0 // loop_footer_branch
    %13 = sbr.rel target = $region3
  $region8: #{tpu_custom_call.1} parent=0 // loop_exit
    _

</llo_original>
